<compile_context>
chip_gen: v5e
topology: v5e:2x2
jax: 0.10.0
libtpu: 0.0.40
codegen_flags: <defaults>
</compile_context>

<pallas_src>
import jax
import jax.numpy as jnp
from jax.experimental import pallas as pl
from jax.experimental.pallas import tpu as pltpu

LANES = 128


def _make_kernel(dims):
    """Build the unrolled VPU forward kernel for layer dims [(fan_in, fan_out), ...]."""
    n_layers = len(dims)

    def kernel(p_ref, x_ref, o_ref):
        # p_ref: flat f32 params in SMEM, per layer laid out as [W (o-major), b].
        # x_ref: [F_in, TC, 128]  (feature, batch-chunk, batch-lane) in VMEM.
        # o_ref: [F_out, TC, 128] in VMEM.
        h = [x_ref[k] for k in range(dims[0][0])]  # list of (TC, 128) dense tiles
        off = 0
        for li, (fin, fout) in enumerate(dims):
            w_off = off
            b_off = off + fin * fout
            new_h = []
            for o in range(fout):
                acc = h[0] * p_ref[w_off + o * fin]
                for k in range(1, fin):
                    acc = acc + h[k] * p_ref[w_off + o * fin + k]
                acc = acc + p_ref[b_off + o]
                if li < n_layers - 1:
                    acc = jnp.maximum(acc, 0.0)
                new_h.append(acc)
            h = new_h
            off = b_off + fout
        for o, v in enumerate(h):
            o_ref[o] = v

    return kernel


def irsinet_forward(x, params, *, max_tile_chunks=64):
    """Forward pass of IrsiNet.

    x:      [B, 4] float32
    params: list of (W, b) in PyTorch convention, W: [out, in], b: [out]
    returns [B, 3] float32
    """
    B, f_in = x.shape
    dims = tuple((int(w.shape[1]), int(w.shape[0])) for (w, _) in params)
    assert dims[0][0] == f_in
    f_out = dims[-1][1]

    # Pack every weight/bias into one flat f32 buffer (single SMEM-resident input).
    pieces = []
    for (w, b) in params:
        pieces.append(w.reshape(-1).astype(jnp.float32))  # index = o * fan_in + k
        pieces.append(b.reshape(-1).astype(jnp.float32))
    pbuf = jnp.concatenate(pieces)

    # Batch tiling: each lane column holds one batch row; tile up to `max_tile_chunks`
    # sublane-chunks (= up to 8192 rows) per grid step.
    n_chunks = -(-B // LANES)
    if n_chunks <= max_tile_chunks:
        tile_chunks = n_chunks                        # block == full dim (always legal)
    else:
        tile_chunks = max_tile_chunks                 # multiple of 8
        n_chunks = -(-n_chunks // tile_chunks) * tile_chunks
    b_pad = n_chunks * LANES

    if b_pad != B:
        x = jnp.pad(x, ((0, b_pad - B), (0, 0)))
    # [B_pad, F] -> [F, chunks, 128]: batch on the lane axis (lane-dense loads/stores).
    x3 = x.T.reshape(f_in, n_chunks, LANES)

    out3 = pl.pallas_call(
        _make_kernel(dims),
        out_shape=jax.ShapeDtypeStruct((f_out, n_chunks, LANES), jnp.float32),
        grid=(n_chunks // tile_chunks,),
        in_specs=[
            pl.BlockSpec(memory_space=pltpu.MemorySpace.SMEM),              # packed params
            pl.BlockSpec((f_in, tile_chunks, LANES), lambda i: (0, i, 0)),  # x tile
        ],
        out_specs=pl.BlockSpec((f_out, tile_chunks, LANES), lambda i: (0, i, 0)),
        compiler_params=pltpu.CompilerParams(
            dimension_semantics=("parallel",),
        ),
    )(pbuf, x3)

    return out3.reshape(f_out, b_pad).T[:B]


def init_params(key):
    """Deterministic init mirroring nn.Linear: W [out, in], b [out], U(+-1/sqrt(fan_in))."""
    dims = [(4, 12), (12, 8), (8, 4), (4, 3)]
    params = []
    for fan_in, fan_out in dims:
        key, kw, kb = jax.random.split(key, 3)
        bound = 1.0 / jnp.sqrt(float(fan_in))
        w = jax.random.uniform(kw, (fan_out, fan_in), jnp.float32, -bound, bound)
        b = jax.random.uniform(kb, (fan_out,), jnp.float32, -bound, bound)
        params.append((w, b))
    return params


def irsinet_reference(x, params):
    h = x
    for i, (w, b) in enumerate(params):
        h = h @ w.T + b
        if i < len(params) - 1:
            h = jnp.maximum(h, 0.0)
    return h


if __name__ == "__main__":
    key = jax.random.PRNGKey(0)
    key, kx = jax.random.split(key)

    # Iris-like input: 150 samples x 4 float32 features in [0, 8).
    B = 150
    x = jax.random.uniform(kx, (B, 4), jnp.float32, 0.0, 8.0)

    params = init_params(key)

    out = irsinet_forward(x, params)
    out = jax.block_until_ready(out)

    ref = irsinet_reference(x, params)
    assert out.shape == (B, 3)
    assert jnp.allclose(out, ref, atol=2e-5, rtol=2e-5), float(jnp.max(jnp.abs(out - ref)))

    print("KERNEL_OK")
</pallas_src>

<mosaic_0001>
module attributes {stable_mosaic.version = 11 : i64} {
  func.func @kernel(%arg0: i32, %arg1: memref<215xf32, #tpu.memory_space<smem>>, %arg2: memref<4x2x128xf32, #tpu.memory_space<vmem>>, %arg3: memref<3x2x128xf32, #tpu.memory_space<vmem>>) attributes {dimension_semantics = [#tpu.dimension_semantics<parallel>], iteration_bounds = array<i64: 1>, scalar_prefetch = 0 : i64, scratch_operands = 0 : i64, tpu.core_type = #tpu.core_type<tc>, window_params = [{transform_indices = @transform_0, window_bounds = array<i64: 215>}, {transform_indices = @transform_1, window_bounds = array<i64: 4, 2, 128>}, {transform_indices = @transform_2, window_bounds = array<i64: 3, 2, 128>}]} {
    %c0 = arith.constant 0 : index
    %c0_0 = arith.constant 0 : index
    %c0_1 = arith.constant 0 : index
    %0 = vector.load %arg2[%c0, %c0_0, %c0_1] : memref<4x2x128xf32, #tpu.memory_space<vmem>>, vector<1x2x128xf32>
    %1 = vector.shape_cast %0 : vector<1x2x128xf32> to vector<2x128xf32>
    %c1 = arith.constant 1 : index
    %c0_2 = arith.constant 0 : index
    %c0_3 = arith.constant 0 : index
    %2 = vector.load %arg2[%c1, %c0_2, %c0_3] : memref<4x2x128xf32, #tpu.memory_space<vmem>>, vector<1x2x128xf32>
    %3 = vector.shape_cast %2 : vector<1x2x128xf32> to vector<2x128xf32>
    %c2 = arith.constant 2 : index
    %c0_4 = arith.constant 0 : index
    %c0_5 = arith.constant 0 : index
    %4 = vector.load %arg2[%c2, %c0_4, %c0_5] : memref<4x2x128xf32, #tpu.memory_space<vmem>>, vector<1x2x128xf32>
    %5 = vector.shape_cast %4 : vector<1x2x128xf32> to vector<2x128xf32>
    %c3 = arith.constant 3 : index
    %c0_6 = arith.constant 0 : index
    %c0_7 = arith.constant 0 : index
    %6 = vector.load %arg2[%c3, %c0_6, %c0_7] : memref<4x2x128xf32, #tpu.memory_space<vmem>>, vector<1x2x128xf32>
    %7 = vector.shape_cast %6 : vector<1x2x128xf32> to vector<2x128xf32>
    %c0_8 = arith.constant 0 : index
    %8 = memref.load %arg1[%c0_8] : memref<215xf32, #tpu.memory_space<smem>>
    %9 = vector.broadcast %8 : f32 to vector<2x128xf32>
    %10 = arith.mulf %1, %9 : vector<2x128xf32>
    %c1_9 = arith.constant 1 : index
    %11 = memref.load %arg1[%c1_9] : memref<215xf32, #tpu.memory_space<smem>>
    %12 = vector.broadcast %11 : f32 to vector<2x128xf32>
    %13 = arith.mulf %3, %12 : vector<2x128xf32>
    %14 = arith.addf %10, %13 : vector<2x128xf32>
    %c2_10 = arith.constant 2 : index
    %15 = memref.load %arg1[%c2_10] : memref<215xf32, #tpu.memory_space<smem>>
    %16 = vector.broadcast %15 : f32 to vector<2x128xf32>
    %17 = arith.mulf %5, %16 : vector<2x128xf32>
    %18 = arith.addf %14, %17 : vector<2x128xf32>
    %c3_11 = arith.constant 3 : index
    %19 = memref.load %arg1[%c3_11] : memref<215xf32, #tpu.memory_space<smem>>
    %20 = vector.broadcast %19 : f32 to vector<2x128xf32>
    %21 = arith.mulf %7, %20 : vector<2x128xf32>
    %22 = arith.addf %18, %21 : vector<2x128xf32>
    %c48 = arith.constant 48 : index
    %23 = memref.load %arg1[%c48] : memref<215xf32, #tpu.memory_space<smem>>
    %24 = vector.broadcast %23 : f32 to vector<2x128xf32>
    %25 = arith.addf %22, %24 : vector<2x128xf32>
    %cst = arith.constant 0.000000e+00 : f32
    %26 = vector.broadcast %cst : f32 to vector<2x128xf32>
    %27 = arith.maximumf %25, %26 : vector<2x128xf32>
    %c4 = arith.constant 4 : index
    %28 = memref.load %arg1[%c4] : memref<215xf32, #tpu.memory_space<smem>>
    %29 = vector.broadcast %28 : f32 to vector<2x128xf32>
    %30 = arith.mulf %1, %29 : vector<2x128xf32>
    %c5 = arith.constant 5 : index
    %31 = memref.load %arg1[%c5] : memref<215xf32, #tpu.memory_space<smem>>
    %32 = vector.broadcast %31 : f32 to vector<2x128xf32>
    %33 = arith.mulf %3, %32 : vector<2x128xf32>
    %34 = arith.addf %30, %33 : vector<2x128xf32>
    %c6 = arith.constant 6 : index
    %35 = memref.load %arg1[%c6] : memref<215xf32, #tpu.memory_space<smem>>
    %36 = vector.broadcast %35 : f32 to vector<2x128xf32>
    %37 = arith.mulf %5, %36 : vector<2x128xf32>
    %38 = arith.addf %34, %37 : vector<2x128xf32>
    %c7 = arith.constant 7 : index
    %39 = memref.load %arg1[%c7] : memref<215xf32, #tpu.memory_space<smem>>
    %40 = vector.broadcast %39 : f32 to vector<2x128xf32>
    %41 = arith.mulf %7, %40 : vector<2x128xf32>
    %42 = arith.addf %38, %41 : vector<2x128xf32>
    %c49 = arith.constant 49 : index
    %43 = memref.load %arg1[%c49] : memref<215xf32, #tpu.memory_space<smem>>
    %44 = vector.broadcast %43 : f32 to vector<2x128xf32>
    %45 = arith.addf %42, %44 : vector<2x128xf32>
    %cst_12 = arith.constant 0.000000e+00 : f32
    %46 = vector.broadcast %cst_12 : f32 to vector<2x128xf32>
    %47 = arith.maximumf %45, %46 : vector<2x128xf32>
    %c8 = arith.constant 8 : index
    %48 = memref.load %arg1[%c8] : memref<215xf32, #tpu.memory_space<smem>>
    %49 = vector.broadcast %48 : f32 to vector<2x128xf32>
    %50 = arith.mulf %1, %49 : vector<2x128xf32>
    %c9 = arith.constant 9 : index
    %51 = memref.load %arg1[%c9] : memref<215xf32, #tpu.memory_space<smem>>
    %52 = vector.broadcast %51 : f32 to vector<2x128xf32>
    %53 = arith.mulf %3, %52 : vector<2x128xf32>
    %54 = arith.addf %50, %53 : vector<2x128xf32>
    %c10 = arith.constant 10 : index
    %55 = memref.load %arg1[%c10] : memref<215xf32, #tpu.memory_space<smem>>
    %56 = vector.broadcast %55 : f32 to vector<2x128xf32>
    %57 = arith.mulf %5, %56 : vector<2x128xf32>
    %58 = arith.addf %54, %57 : vector<2x128xf32>
    %c11 = arith.constant 11 : index
    %59 = memref.load %arg1[%c11] : memref<215xf32, #tpu.memory_space<smem>>
    %60 = vector.broadcast %59 : f32 to vector<2x128xf32>
    %61 = arith.mulf %7, %60 : vector<2x128xf32>
    %62 = arith.addf %58, %61 : vector<2x128xf32>
    %c50 = arith.constant 50 : index
    %63 = memref.load %arg1[%c50] : memref<215xf32, #tpu.memory_space<smem>>
    %64 = vector.broadcast %63 : f32 to vector<2x128xf32>
    %65 = arith.addf %62, %64 : vector<2x128xf32>
    %cst_13 = arith.constant 0.000000e+00 : f32
    %66 = vector.broadcast %cst_13 : f32 to vector<2x128xf32>
    %67 = arith.maximumf %65, %66 : vector<2x128xf32>
    %c12 = arith.constant 12 : index
    %68 = memref.load %arg1[%c12] : memref<215xf32, #tpu.memory_space<smem>>
    %69 = vector.broadcast %68 : f32 to vector<2x128xf32>
    %70 = arith.mulf %1, %69 : vector<2x128xf32>
    %c13 = arith.constant 13 : index
    %71 = memref.load %arg1[%c13] : memref<215xf32, #tpu.memory_space<smem>>
    %72 = vector.broadcast %71 : f32 to vector<2x128xf32>
    %73 = arith.mulf %3, %72 : vector<2x128xf32>
    %74 = arith.addf %70, %73 : vector<2x128xf32>
    %c14 = arith.constant 14 : index
    %75 = memref.load %arg1[%c14] : memref<215xf32, #tpu.memory_space<smem>>
    %76 = vector.broadcast %75 : f32 to vector<2x128xf32>
    %77 = arith.mulf %5, %76 : vector<2x128xf32>
    %78 = arith.addf %74, %77 : vector<2x128xf32>
    %c15 = arith.constant 15 : index
    %79 = memref.load %arg1[%c15] : memref<215xf32, #tpu.memory_space<smem>>
    %80 = vector.broadcast %79 : f32 to vector<2x128xf32>
    %81 = arith.mulf %7, %80 : vector<2x128xf32>
    %82 = arith.addf %78, %81 : vector<2x128xf32>
    %c51 = arith.constant 51 : index
    %83 = memref.load %arg1[%c51] : memref<215xf32, #tpu.memory_space<smem>>
    %84 = vector.broadcast %83 : f32 to vector<2x128xf32>
    %85 = arith.addf %82, %84 : vector<2x128xf32>
    %cst_14 = arith.constant 0.000000e+00 : f32
    %86 = vector.broadcast %cst_14 : f32 to vector<2x128xf32>
    %87 = arith.maximumf %85, %86 : vector<2x128xf32>
    %c16 = arith.constant 16 : index
    %88 = memref.load %arg1[%c16] : memref<215xf32, #tpu.memory_space<smem>>
    %89 = vector.broadcast %88 : f32 to vector<2x128xf32>
    %90 = arith.mulf %1, %89 : vector<2x128xf32>
    %c17 = arith.constant 17 : index
    %91 = memref.load %arg1[%c17] : memref<215xf32, #tpu.memory_space<smem>>
    %92 = vector.broadcast %91 : f32 to vector<2x128xf32>
    %93 = arith.mulf %3, %92 : vector<2x128xf32>
    %94 = arith.addf %90, %93 : vector<2x128xf32>
    %c18 = arith.constant 18 : index
    %95 = memref.load %arg1[%c18] : memref<215xf32, #tpu.memory_space<smem>>
    %96 = vector.broadcast %95 : f32 to vector<2x128xf32>
    %97 = arith.mulf %5, %96 : vector<2x128xf32>
    %98 = arith.addf %94, %97 : vector<2x128xf32>
    %c19 = arith.constant 19 : index
    %99 = memref.load %arg1[%c19] : memref<215xf32, #tpu.memory_space<smem>>
    %100 = vector.broadcast %99 : f32 to vector<2x128xf32>
    %101 = arith.mulf %7, %100 : vector<2x128xf32>
    %102 = arith.addf %98, %101 : vector<2x128xf32>
    %c52 = arith.constant 52 : index
    %103 = memref.load %arg1[%c52] : memref<215xf32, #tpu.memory_space<smem>>
    %104 = vector.broadcast %103 : f32 to vector<2x128xf32>
    %105 = arith.addf %102, %104 : vector<2x128xf32>
    %cst_15 = arith.constant 0.000000e+00 : f32
    %106 = vector.broadcast %cst_15 : f32 to vector<2x128xf32>
    %107 = arith.maximumf %105, %106 : vector<2x128xf32>
    %c20 = arith.constant 20 : index
    %108 = memref.load %arg1[%c20] : memref<215xf32, #tpu.memory_space<smem>>
    %109 = vector.broadcast %108 : f32 to vector<2x128xf32>
    %110 = arith.mulf %1, %109 : vector<2x128xf32>
    %c21 = arith.constant 21 : index
    %111 = memref.load %arg1[%c21] : memref<215xf32, #tpu.memory_space<smem>>
    %112 = vector.broadcast %111 : f32 to vector<2x128xf32>
    %113 = arith.mulf %3, %112 : vector<2x128xf32>
    %114 = arith.addf %110, %113 : vector<2x128xf32>
    %c22 = arith.constant 22 : index
    %115 = memref.load %arg1[%c22] : memref<215xf32, #tpu.memory_space<smem>>
    %116 = vector.broadcast %115 : f32 to vector<2x128xf32>
    %117 = arith.mulf %5, %116 : vector<2x128xf32>
    %118 = arith.addf %114, %117 : vector<2x128xf32>
    %c23 = arith.constant 23 : index
    %119 = memref.load %arg1[%c23] : memref<215xf32, #tpu.memory_space<smem>>
    %120 = vector.broadcast %119 : f32 to vector<2x128xf32>
    %121 = arith.mulf %7, %120 : vector<2x128xf32>
    %122 = arith.addf %118, %121 : vector<2x128xf32>
    %c53 = arith.constant 53 : index
    %123 = memref.load %arg1[%c53] : memref<215xf32, #tpu.memory_space<smem>>
    %124 = vector.broadcast %123 : f32 to vector<2x128xf32>
    %125 = arith.addf %122, %124 : vector<2x128xf32>
    %cst_16 = arith.constant 0.000000e+00 : f32
    %126 = vector.broadcast %cst_16 : f32 to vector<2x128xf32>
    %127 = arith.maximumf %125, %126 : vector<2x128xf32>
    %c24 = arith.constant 24 : index
    %128 = memref.load %arg1[%c24] : memref<215xf32, #tpu.memory_space<smem>>
    %129 = vector.broadcast %128 : f32 to vector<2x128xf32>
    %130 = arith.mulf %1, %129 : vector<2x128xf32>
    %c25 = arith.constant 25 : index
    %131 = memref.load %arg1[%c25] : memref<215xf32, #tpu.memory_space<smem>>
    %132 = vector.broadcast %131 : f32 to vector<2x128xf32>
    %133 = arith.mulf %3, %132 : vector<2x128xf32>
    %134 = arith.addf %130, %133 : vector<2x128xf32>
    %c26 = arith.constant 26 : index
    %135 = memref.load %arg1[%c26] : memref<215xf32, #tpu.memory_space<smem>>
    %136 = vector.broadcast %135 : f32 to vector<2x128xf32>
    %137 = arith.mulf %5, %136 : vector<2x128xf32>
    %138 = arith.addf %134, %137 : vector<2x128xf32>
    %c27 = arith.constant 27 : index
    %139 = memref.load %arg1[%c27] : memref<215xf32, #tpu.memory_space<smem>>
    %140 = vector.broadcast %139 : f32 to vector<2x128xf32>
    %141 = arith.mulf %7, %140 : vector<2x128xf32>
    %142 = arith.addf %138, %141 : vector<2x128xf32>
    %c54 = arith.constant 54 : index
    %143 = memref.load %arg1[%c54] : memref<215xf32, #tpu.memory_space<smem>>
    %144 = vector.broadcast %143 : f32 to vector<2x128xf32>
    %145 = arith.addf %142, %144 : vector<2x128xf32>
    %cst_17 = arith.constant 0.000000e+00 : f32
    %146 = vector.broadcast %cst_17 : f32 to vector<2x128xf32>
    %147 = arith.maximumf %145, %146 : vector<2x128xf32>
    %c28 = arith.constant 28 : index
    %148 = memref.load %arg1[%c28] : memref<215xf32, #tpu.memory_space<smem>>
    %149 = vector.broadcast %148 : f32 to vector<2x128xf32>
    %150 = arith.mulf %1, %149 : vector<2x128xf32>
    %c29 = arith.constant 29 : index
    %151 = memref.load %arg1[%c29] : memref<215xf32, #tpu.memory_space<smem>>
    %152 = vector.broadcast %151 : f32 to vector<2x128xf32>
    %153 = arith.mulf %3, %152 : vector<2x128xf32>
    %154 = arith.addf %150, %153 : vector<2x128xf32>
    %c30 = arith.constant 30 : index
    %155 = memref.load %arg1[%c30] : memref<215xf32, #tpu.memory_space<smem>>
    %156 = vector.broadcast %155 : f32 to vector<2x128xf32>
    %157 = arith.mulf %5, %156 : vector<2x128xf32>
    %158 = arith.addf %154, %157 : vector<2x128xf32>
    %c31 = arith.constant 31 : index
    %159 = memref.load %arg1[%c31] : memref<215xf32, #tpu.memory_space<smem>>
    %160 = vector.broadcast %159 : f32 to vector<2x128xf32>
    %161 = arith.mulf %7, %160 : vector<2x128xf32>
    %162 = arith.addf %158, %161 : vector<2x128xf32>
    %c55 = arith.constant 55 : index
    %163 = memref.load %arg1[%c55] : memref<215xf32, #tpu.memory_space<smem>>
    %164 = vector.broadcast %163 : f32 to vector<2x128xf32>
    %165 = arith.addf %162, %164 : vector<2x128xf32>
    %cst_18 = arith.constant 0.000000e+00 : f32
    %166 = vector.broadcast %cst_18 : f32 to vector<2x128xf32>
    %167 = arith.maximumf %165, %166 : vector<2x128xf32>
    %c32 = arith.constant 32 : index
    %168 = memref.load %arg1[%c32] : memref<215xf32, #tpu.memory_space<smem>>
    %169 = vector.broadcast %168 : f32 to vector<2x128xf32>
    %170 = arith.mulf %1, %169 : vector<2x128xf32>
    %c33 = arith.constant 33 : index
    %171 = memref.load %arg1[%c33] : memref<215xf32, #tpu.memory_space<smem>>
    %172 = vector.broadcast %171 : f32 to vector<2x128xf32>
    %173 = arith.mulf %3, %172 : vector<2x128xf32>
    %174 = arith.addf %170, %173 : vector<2x128xf32>
    %c34 = arith.constant 34 : index
    %175 = memref.load %arg1[%c34] : memref<215xf32, #tpu.memory_space<smem>>
    %176 = vector.broadcast %175 : f32 to vector<2x128xf32>
    %177 = arith.mulf %5, %176 : vector<2x128xf32>
    %178 = arith.addf %174, %177 : vector<2x128xf32>
    %c35 = arith.constant 35 : index
    %179 = memref.load %arg1[%c35] : memref<215xf32, #tpu.memory_space<smem>>
    %180 = vector.broadcast %179 : f32 to vector<2x128xf32>
    %181 = arith.mulf %7, %180 : vector<2x128xf32>
    %182 = arith.addf %178, %181 : vector<2x128xf32>
    %c56 = arith.constant 56 : index
    %183 = memref.load %arg1[%c56] : memref<215xf32, #tpu.memory_space<smem>>
    %184 = vector.broadcast %183 : f32 to vector<2x128xf32>
    %185 = arith.addf %182, %184 : vector<2x128xf32>
    %cst_19 = arith.constant 0.000000e+00 : f32
    %186 = vector.broadcast %cst_19 : f32 to vector<2x128xf32>
    %187 = arith.maximumf %185, %186 : vector<2x128xf32>
    %c36 = arith.constant 36 : index
    %188 = memref.load %arg1[%c36] : memref<215xf32, #tpu.memory_space<smem>>
    %189 = vector.broadcast %188 : f32 to vector<2x128xf32>
    %190 = arith.mulf %1, %189 : vector<2x128xf32>
    %c37 = arith.constant 37 : index
    %191 = memref.load %arg1[%c37] : memref<215xf32, #tpu.memory_space<smem>>
    %192 = vector.broadcast %191 : f32 to vector<2x128xf32>
    %193 = arith.mulf %3, %192 : vector<2x128xf32>
    %194 = arith.addf %190, %193 : vector<2x128xf32>
    %c38 = arith.constant 38 : index
    %195 = memref.load %arg1[%c38] : memref<215xf32, #tpu.memory_space<smem>>
    %196 = vector.broadcast %195 : f32 to vector<2x128xf32>
    %197 = arith.mulf %5, %196 : vector<2x128xf32>
    %198 = arith.addf %194, %197 : vector<2x128xf32>
    %c39 = arith.constant 39 : index
    %199 = memref.load %arg1[%c39] : memref<215xf32, #tpu.memory_space<smem>>
    %200 = vector.broadcast %199 : f32 to vector<2x128xf32>
    %201 = arith.mulf %7, %200 : vector<2x128xf32>
    %202 = arith.addf %198, %201 : vector<2x128xf32>
    %c57 = arith.constant 57 : index
    %203 = memref.load %arg1[%c57] : memref<215xf32, #tpu.memory_space<smem>>
    %204 = vector.broadcast %203 : f32 to vector<2x128xf32>
    %205 = arith.addf %202, %204 : vector<2x128xf32>
    %cst_20 = arith.constant 0.000000e+00 : f32
    %206 = vector.broadcast %cst_20 : f32 to vector<2x128xf32>
    %207 = arith.maximumf %205, %206 : vector<2x128xf32>
    %c40 = arith.constant 40 : index
    %208 = memref.load %arg1[%c40] : memref<215xf32, #tpu.memory_space<smem>>
    %209 = vector.broadcast %208 : f32 to vector<2x128xf32>
    %210 = arith.mulf %1, %209 : vector<2x128xf32>
    %c41 = arith.constant 41 : index
    %211 = memref.load %arg1[%c41] : memref<215xf32, #tpu.memory_space<smem>>
    %212 = vector.broadcast %211 : f32 to vector<2x128xf32>
    %213 = arith.mulf %3, %212 : vector<2x128xf32>
    %214 = arith.addf %210, %213 : vector<2x128xf32>
    %c42 = arith.constant 42 : index
    %215 = memref.load %arg1[%c42] : memref<215xf32, #tpu.memory_space<smem>>
    %216 = vector.broadcast %215 : f32 to vector<2x128xf32>
    %217 = arith.mulf %5, %216 : vector<2x128xf32>
    %218 = arith.addf %214, %217 : vector<2x128xf32>
    %c43 = arith.constant 43 : index
    %219 = memref.load %arg1[%c43] : memref<215xf32, #tpu.memory_space<smem>>
    %220 = vector.broadcast %219 : f32 to vector<2x128xf32>
    %221 = arith.mulf %7, %220 : vector<2x128xf32>
    %222 = arith.addf %218, %221 : vector<2x128xf32>
    %c58 = arith.constant 58 : index
    %223 = memref.load %arg1[%c58] : memref<215xf32, #tpu.memory_space<smem>>
    %224 = vector.broadcast %223 : f32 to vector<2x128xf32>
    %225 = arith.addf %222, %224 : vector<2x128xf32>
    %cst_21 = arith.constant 0.000000e+00 : f32
    %226 = vector.broadcast %cst_21 : f32 to vector<2x128xf32>
    %227 = arith.maximumf %225, %226 : vector<2x128xf32>
    %c44 = arith.constant 44 : index
    %228 = memref.load %arg1[%c44] : memref<215xf32, #tpu.memory_space<smem>>
    %229 = vector.broadcast %228 : f32 to vector<2x128xf32>
    %230 = arith.mulf %1, %229 : vector<2x128xf32>
    %c45 = arith.constant 45 : index
    %231 = memref.load %arg1[%c45] : memref<215xf32, #tpu.memory_space<smem>>
    %232 = vector.broadcast %231 : f32 to vector<2x128xf32>
    %233 = arith.mulf %3, %232 : vector<2x128xf32>
    %234 = arith.addf %230, %233 : vector<2x128xf32>
    %c46 = arith.constant 46 : index
    %235 = memref.load %arg1[%c46] : memref<215xf32, #tpu.memory_space<smem>>
    %236 = vector.broadcast %235 : f32 to vector<2x128xf32>
    %237 = arith.mulf %5, %236 : vector<2x128xf32>
    %238 = arith.addf %234, %237 : vector<2x128xf32>
    %c47 = arith.constant 47 : index
    %239 = memref.load %arg1[%c47] : memref<215xf32, #tpu.memory_space<smem>>
    %240 = vector.broadcast %239 : f32 to vector<2x128xf32>
    %241 = arith.mulf %7, %240 : vector<2x128xf32>
    %242 = arith.addf %238, %241 : vector<2x128xf32>
    %c59 = arith.constant 59 : index
    %243 = memref.load %arg1[%c59] : memref<215xf32, #tpu.memory_space<smem>>
    %244 = vector.broadcast %243 : f32 to vector<2x128xf32>
    %245 = arith.addf %242, %244 : vector<2x128xf32>
    %cst_22 = arith.constant 0.000000e+00 : f32
    %246 = vector.broadcast %cst_22 : f32 to vector<2x128xf32>
    %247 = arith.maximumf %245, %246 : vector<2x128xf32>
    %c60 = arith.constant 60 : index
    %248 = memref.load %arg1[%c60] : memref<215xf32, #tpu.memory_space<smem>>
    %249 = vector.broadcast %248 : f32 to vector<2x128xf32>
    %250 = arith.mulf %27, %249 : vector<2x128xf32>
    %c61 = arith.constant 61 : index
    %251 = memref.load %arg1[%c61] : memref<215xf32, #tpu.memory_space<smem>>
    %252 = vector.broadcast %251 : f32 to vector<2x128xf32>
    %253 = arith.mulf %47, %252 : vector<2x128xf32>
    %254 = arith.addf %250, %253 : vector<2x128xf32>
    %c62 = arith.constant 62 : index
    %255 = memref.load %arg1[%c62] : memref<215xf32, #tpu.memory_space<smem>>
    %256 = vector.broadcast %255 : f32 to vector<2x128xf32>
    %257 = arith.mulf %67, %256 : vector<2x128xf32>
    %258 = arith.addf %254, %257 : vector<2x128xf32>
    %c63 = arith.constant 63 : index
    %259 = memref.load %arg1[%c63] : memref<215xf32, #tpu.memory_space<smem>>
    %260 = vector.broadcast %259 : f32 to vector<2x128xf32>
    %261 = arith.mulf %87, %260 : vector<2x128xf32>
    %262 = arith.addf %258, %261 : vector<2x128xf32>
    %c64 = arith.constant 64 : index
    %263 = memref.load %arg1[%c64] : memref<215xf32, #tpu.memory_space<smem>>
    %264 = vector.broadcast %263 : f32 to vector<2x128xf32>
    %265 = arith.mulf %107, %264 : vector<2x128xf32>
    %266 = arith.addf %262, %265 : vector<2x128xf32>
    %c65 = arith.constant 65 : index
    %267 = memref.load %arg1[%c65] : memref<215xf32, #tpu.memory_space<smem>>
    %268 = vector.broadcast %267 : f32 to vector<2x128xf32>
    %269 = arith.mulf %127, %268 : vector<2x128xf32>
    %270 = arith.addf %266, %269 : vector<2x128xf32>
    %c66 = arith.constant 66 : index
    %271 = memref.load %arg1[%c66] : memref<215xf32, #tpu.memory_space<smem>>
    %272 = vector.broadcast %271 : f32 to vector<2x128xf32>
    %273 = arith.mulf %147, %272 : vector<2x128xf32>
    %274 = arith.addf %270, %273 : vector<2x128xf32>
    %c67 = arith.constant 67 : index
    %275 = memref.load %arg1[%c67] : memref<215xf32, #tpu.memory_space<smem>>
    %276 = vector.broadcast %275 : f32 to vector<2x128xf32>
    %277 = arith.mulf %167, %276 : vector<2x128xf32>
    %278 = arith.addf %274, %277 : vector<2x128xf32>
    %c68 = arith.constant 68 : index
    %279 = memref.load %arg1[%c68] : memref<215xf32, #tpu.memory_space<smem>>
    %280 = vector.broadcast %279 : f32 to vector<2x128xf32>
    %281 = arith.mulf %187, %280 : vector<2x128xf32>
    %282 = arith.addf %278, %281 : vector<2x128xf32>
    %c69 = arith.constant 69 : index
    %283 = memref.load %arg1[%c69] : memref<215xf32, #tpu.memory_space<smem>>
    %284 = vector.broadcast %283 : f32 to vector<2x128xf32>
    %285 = arith.mulf %207, %284 : vector<2x128xf32>
    %286 = arith.addf %282, %285 : vector<2x128xf32>
    %c70 = arith.constant 70 : index
    %287 = memref.load %arg1[%c70] : memref<215xf32, #tpu.memory_space<smem>>
    %288 = vector.broadcast %287 : f32 to vector<2x128xf32>
    %289 = arith.mulf %227, %288 : vector<2x128xf32>
    %290 = arith.addf %286, %289 : vector<2x128xf32>
    %c71 = arith.constant 71 : index
    %291 = memref.load %arg1[%c71] : memref<215xf32, #tpu.memory_space<smem>>
    %292 = vector.broadcast %291 : f32 to vector<2x128xf32>
    %293 = arith.mulf %247, %292 : vector<2x128xf32>
    %294 = arith.addf %290, %293 : vector<2x128xf32>
    %c156 = arith.constant 156 : index
    %295 = memref.load %arg1[%c156] : memref<215xf32, #tpu.memory_space<smem>>
    %296 = vector.broadcast %295 : f32 to vector<2x128xf32>
    %297 = arith.addf %294, %296 : vector<2x128xf32>
    %cst_23 = arith.constant 0.000000e+00 : f32
    %298 = vector.broadcast %cst_23 : f32 to vector<2x128xf32>
    %299 = arith.maximumf %297, %298 : vector<2x128xf32>
    %c72 = arith.constant 72 : index
    %300 = memref.load %arg1[%c72] : memref<215xf32, #tpu.memory_space<smem>>
    %301 = vector.broadcast %300 : f32 to vector<2x128xf32>
    %302 = arith.mulf %27, %301 : vector<2x128xf32>
    %c73 = arith.constant 73 : index
    %303 = memref.load %arg1[%c73] : memref<215xf32, #tpu.memory_space<smem>>
    %304 = vector.broadcast %303 : f32 to vector<2x128xf32>
    %305 = arith.mulf %47, %304 : vector<2x128xf32>
    %306 = arith.addf %302, %305 : vector<2x128xf32>
    %c74 = arith.constant 74 : index
    %307 = memref.load %arg1[%c74] : memref<215xf32, #tpu.memory_space<smem>>
    %308 = vector.broadcast %307 : f32 to vector<2x128xf32>
    %309 = arith.mulf %67, %308 : vector<2x128xf32>
    %310 = arith.addf %306, %309 : vector<2x128xf32>
    %c75 = arith.constant 75 : index
    %311 = memref.load %arg1[%c75] : memref<215xf32, #tpu.memory_space<smem>>
    %312 = vector.broadcast %311 : f32 to vector<2x128xf32>
    %313 = arith.mulf %87, %312 : vector<2x128xf32>
    %314 = arith.addf %310, %313 : vector<2x128xf32>
    %c76 = arith.constant 76 : index
    %315 = memref.load %arg1[%c76] : memref<215xf32, #tpu.memory_space<smem>>
    %316 = vector.broadcast %315 : f32 to vector<2x128xf32>
    %317 = arith.mulf %107, %316 : vector<2x128xf32>
    %318 = arith.addf %314, %317 : vector<2x128xf32>
    %c77 = arith.constant 77 : index
    %319 = memref.load %arg1[%c77] : memref<215xf32, #tpu.memory_space<smem>>
    %320 = vector.broadcast %319 : f32 to vector<2x128xf32>
    %321 = arith.mulf %127, %320 : vector<2x128xf32>
    %322 = arith.addf %318, %321 : vector<2x128xf32>
    %c78 = arith.constant 78 : index
    %323 = memref.load %arg1[%c78] : memref<215xf32, #tpu.memory_space<smem>>
    %324 = vector.broadcast %323 : f32 to vector<2x128xf32>
    %325 = arith.mulf %147, %324 : vector<2x128xf32>
    %326 = arith.addf %322, %325 : vector<2x128xf32>
    %c79 = arith.constant 79 : index
    %327 = memref.load %arg1[%c79] : memref<215xf32, #tpu.memory_space<smem>>
    %328 = vector.broadcast %327 : f32 to vector<2x128xf32>
    %329 = arith.mulf %167, %328 : vector<2x128xf32>
    %330 = arith.addf %326, %329 : vector<2x128xf32>
    %c80 = arith.constant 80 : index
    %331 = memref.load %arg1[%c80] : memref<215xf32, #tpu.memory_space<smem>>
    %332 = vector.broadcast %331 : f32 to vector<2x128xf32>
    %333 = arith.mulf %187, %332 : vector<2x128xf32>
    %334 = arith.addf %330, %333 : vector<2x128xf32>
    %c81 = arith.constant 81 : index
    %335 = memref.load %arg1[%c81] : memref<215xf32, #tpu.memory_space<smem>>
    %336 = vector.broadcast %335 : f32 to vector<2x128xf32>
    %337 = arith.mulf %207, %336 : vector<2x128xf32>
    %338 = arith.addf %334, %337 : vector<2x128xf32>
    %c82 = arith.constant 82 : index
    %339 = memref.load %arg1[%c82] : memref<215xf32, #tpu.memory_space<smem>>
    %340 = vector.broadcast %339 : f32 to vector<2x128xf32>
    %341 = arith.mulf %227, %340 : vector<2x128xf32>
    %342 = arith.addf %338, %341 : vector<2x128xf32>
    %c83 = arith.constant 83 : index
    %343 = memref.load %arg1[%c83] : memref<215xf32, #tpu.memory_space<smem>>
    %344 = vector.broadcast %343 : f32 to vector<2x128xf32>
    %345 = arith.mulf %247, %344 : vector<2x128xf32>
    %346 = arith.addf %342, %345 : vector<2x128xf32>
    %c157 = arith.constant 157 : index
    %347 = memref.load %arg1[%c157] : memref<215xf32, #tpu.memory_space<smem>>
    %348 = vector.broadcast %347 : f32 to vector<2x128xf32>
    %349 = arith.addf %346, %348 : vector<2x128xf32>
    %cst_24 = arith.constant 0.000000e+00 : f32
    %350 = vector.broadcast %cst_24 : f32 to vector<2x128xf32>
    %351 = arith.maximumf %349, %350 : vector<2x128xf32>
    %c84 = arith.constant 84 : index
    %352 = memref.load %arg1[%c84] : memref<215xf32, #tpu.memory_space<smem>>
    %353 = vector.broadcast %352 : f32 to vector<2x128xf32>
    %354 = arith.mulf %27, %353 : vector<2x128xf32>
    %c85 = arith.constant 85 : index
    %355 = memref.load %arg1[%c85] : memref<215xf32, #tpu.memory_space<smem>>
    %356 = vector.broadcast %355 : f32 to vector<2x128xf32>
    %357 = arith.mulf %47, %356 : vector<2x128xf32>
    %358 = arith.addf %354, %357 : vector<2x128xf32>
    %c86 = arith.constant 86 : index
    %359 = memref.load %arg1[%c86] : memref<215xf32, #tpu.memory_space<smem>>
    %360 = vector.broadcast %359 : f32 to vector<2x128xf32>
    %361 = arith.mulf %67, %360 : vector<2x128xf32>
    %362 = arith.addf %358, %361 : vector<2x128xf32>
    %c87 = arith.constant 87 : index
    %363 = memref.load %arg1[%c87] : memref<215xf32, #tpu.memory_space<smem>>
    %364 = vector.broadcast %363 : f32 to vector<2x128xf32>
    %365 = arith.mulf %87, %364 : vector<2x128xf32>
    %366 = arith.addf %362, %365 : vector<2x128xf32>
    %c88 = arith.constant 88 : index
    %367 = memref.load %arg1[%c88] : memref<215xf32, #tpu.memory_space<smem>>
    %368 = vector.broadcast %367 : f32 to vector<2x128xf32>
    %369 = arith.mulf %107, %368 : vector<2x128xf32>
    %370 = arith.addf %366, %369 : vector<2x128xf32>
    %c89 = arith.constant 89 : index
    %371 = memref.load %arg1[%c89] : memref<215xf32, #tpu.memory_space<smem>>
    %372 = vector.broadcast %371 : f32 to vector<2x128xf32>
    %373 = arith.mulf %127, %372 : vector<2x128xf32>
    %374 = arith.addf %370, %373 : vector<2x128xf32>
    %c90 = arith.constant 90 : index
    %375 = memref.load %arg1[%c90] : memref<215xf32, #tpu.memory_space<smem>>
    %376 = vector.broadcast %375 : f32 to vector<2x128xf32>
    %377 = arith.mulf %147, %376 : vector<2x128xf32>
    %378 = arith.addf %374, %377 : vector<2x128xf32>
    %c91 = arith.constant 91 : index
    %379 = memref.load %arg1[%c91] : memref<215xf32, #tpu.memory_space<smem>>
    %380 = vector.broadcast %379 : f32 to vector<2x128xf32>
    %381 = arith.mulf %167, %380 : vector<2x128xf32>
    %382 = arith.addf %378, %381 : vector<2x128xf32>
    %c92 = arith.constant 92 : index
    %383 = memref.load %arg1[%c92] : memref<215xf32, #tpu.memory_space<smem>>
    %384 = vector.broadcast %383 : f32 to vector<2x128xf32>
    %385 = arith.mulf %187, %384 : vector<2x128xf32>
    %386 = arith.addf %382, %385 : vector<2x128xf32>
    %c93 = arith.constant 93 : index
    %387 = memref.load %arg1[%c93] : memref<215xf32, #tpu.memory_space<smem>>
    %388 = vector.broadcast %387 : f32 to vector<2x128xf32>
    %389 = arith.mulf %207, %388 : vector<2x128xf32>
    %390 = arith.addf %386, %389 : vector<2x128xf32>
    %c94 = arith.constant 94 : index
    %391 = memref.load %arg1[%c94] : memref<215xf32, #tpu.memory_space<smem>>
    %392 = vector.broadcast %391 : f32 to vector<2x128xf32>
    %393 = arith.mulf %227, %392 : vector<2x128xf32>
    %394 = arith.addf %390, %393 : vector<2x128xf32>
    %c95 = arith.constant 95 : index
    %395 = memref.load %arg1[%c95] : memref<215xf32, #tpu.memory_space<smem>>
    %396 = vector.broadcast %395 : f32 to vector<2x128xf32>
    %397 = arith.mulf %247, %396 : vector<2x128xf32>
    %398 = arith.addf %394, %397 : vector<2x128xf32>
    %c158 = arith.constant 158 : index
    %399 = memref.load %arg1[%c158] : memref<215xf32, #tpu.memory_space<smem>>
    %400 = vector.broadcast %399 : f32 to vector<2x128xf32>
    %401 = arith.addf %398, %400 : vector<2x128xf32>
    %cst_25 = arith.constant 0.000000e+00 : f32
    %402 = vector.broadcast %cst_25 : f32 to vector<2x128xf32>
    %403 = arith.maximumf %401, %402 : vector<2x128xf32>
    %c96 = arith.constant 96 : index
    %404 = memref.load %arg1[%c96] : memref<215xf32, #tpu.memory_space<smem>>
    %405 = vector.broadcast %404 : f32 to vector<2x128xf32>
    %406 = arith.mulf %27, %405 : vector<2x128xf32>
    %c97 = arith.constant 97 : index
    %407 = memref.load %arg1[%c97] : memref<215xf32, #tpu.memory_space<smem>>
    %408 = vector.broadcast %407 : f32 to vector<2x128xf32>
    %409 = arith.mulf %47, %408 : vector<2x128xf32>
    %410 = arith.addf %406, %409 : vector<2x128xf32>
    %c98 = arith.constant 98 : index
    %411 = memref.load %arg1[%c98] : memref<215xf32, #tpu.memory_space<smem>>
    %412 = vector.broadcast %411 : f32 to vector<2x128xf32>
    %413 = arith.mulf %67, %412 : vector<2x128xf32>
    %414 = arith.addf %410, %413 : vector<2x128xf32>
    %c99 = arith.constant 99 : index
    %415 = memref.load %arg1[%c99] : memref<215xf32, #tpu.memory_space<smem>>
    %416 = vector.broadcast %415 : f32 to vector<2x128xf32>
    %417 = arith.mulf %87, %416 : vector<2x128xf32>
    %418 = arith.addf %414, %417 : vector<2x128xf32>
    %c100 = arith.constant 100 : index
    %419 = memref.load %arg1[%c100] : memref<215xf32, #tpu.memory_space<smem>>
    %420 = vector.broadcast %419 : f32 to vector<2x128xf32>
    %421 = arith.mulf %107, %420 : vector<2x128xf32>
    %422 = arith.addf %418, %421 : vector<2x128xf32>
    %c101 = arith.constant 101 : index
    %423 = memref.load %arg1[%c101] : memref<215xf32, #tpu.memory_space<smem>>
    %424 = vector.broadcast %423 : f32 to vector<2x128xf32>
    %425 = arith.mulf %127, %424 : vector<2x128xf32>
    %426 = arith.addf %422, %425 : vector<2x128xf32>
    %c102 = arith.constant 102 : index
    %427 = memref.load %arg1[%c102] : memref<215xf32, #tpu.memory_space<smem>>
    %428 = vector.broadcast %427 : f32 to vector<2x128xf32>
    %429 = arith.mulf %147, %428 : vector<2x128xf32>
    %430 = arith.addf %426, %429 : vector<2x128xf32>
    %c103 = arith.constant 103 : index
    %431 = memref.load %arg1[%c103] : memref<215xf32, #tpu.memory_space<smem>>
    %432 = vector.broadcast %431 : f32 to vector<2x128xf32>
    %433 = arith.mulf %167, %432 : vector<2x128xf32>
    %434 = arith.addf %430, %433 : vector<2x128xf32>
    %c104 = arith.constant 104 : index
    %435 = memref.load %arg1[%c104] : memref<215xf32, #tpu.memory_space<smem>>
    %436 = vector.broadcast %435 : f32 to vector<2x128xf32>
    %437 = arith.mulf %187, %436 : vector<2x128xf32>
    %438 = arith.addf %434, %437 : vector<2x128xf32>
    %c105 = arith.constant 105 : index
    %439 = memref.load %arg1[%c105] : memref<215xf32, #tpu.memory_space<smem>>
    %440 = vector.broadcast %439 : f32 to vector<2x128xf32>
    %441 = arith.mulf %207, %440 : vector<2x128xf32>
    %442 = arith.addf %438, %441 : vector<2x128xf32>
    %c106 = arith.constant 106 : index
    %443 = memref.load %arg1[%c106] : memref<215xf32, #tpu.memory_space<smem>>
    %444 = vector.broadcast %443 : f32 to vector<2x128xf32>
    %445 = arith.mulf %227, %444 : vector<2x128xf32>
    %446 = arith.addf %442, %445 : vector<2x128xf32>
    %c107 = arith.constant 107 : index
    %447 = memref.load %arg1[%c107] : memref<215xf32, #tpu.memory_space<smem>>
    %448 = vector.broadcast %447 : f32 to vector<2x128xf32>
    %449 = arith.mulf %247, %448 : vector<2x128xf32>
    %450 = arith.addf %446, %449 : vector<2x128xf32>
    %c159 = arith.constant 159 : index
    %451 = memref.load %arg1[%c159] : memref<215xf32, #tpu.memory_space<smem>>
    %452 = vector.broadcast %451 : f32 to vector<2x128xf32>
    %453 = arith.addf %450, %452 : vector<2x128xf32>
    %cst_26 = arith.constant 0.000000e+00 : f32
    %454 = vector.broadcast %cst_26 : f32 to vector<2x128xf32>
    %455 = arith.maximumf %453, %454 : vector<2x128xf32>
    %c108 = arith.constant 108 : index
    %456 = memref.load %arg1[%c108] : memref<215xf32, #tpu.memory_space<smem>>
    %457 = vector.broadcast %456 : f32 to vector<2x128xf32>
    %458 = arith.mulf %27, %457 : vector<2x128xf32>
    %c109 = arith.constant 109 : index
    %459 = memref.load %arg1[%c109] : memref<215xf32, #tpu.memory_space<smem>>
    %460 = vector.broadcast %459 : f32 to vector<2x128xf32>
    %461 = arith.mulf %47, %460 : vector<2x128xf32>
    %462 = arith.addf %458, %461 : vector<2x128xf32>
    %c110 = arith.constant 110 : index
    %463 = memref.load %arg1[%c110] : memref<215xf32, #tpu.memory_space<smem>>
    %464 = vector.broadcast %463 : f32 to vector<2x128xf32>
    %465 = arith.mulf %67, %464 : vector<2x128xf32>
    %466 = arith.addf %462, %465 : vector<2x128xf32>
    %c111 = arith.constant 111 : index
    %467 = memref.load %arg1[%c111] : memref<215xf32, #tpu.memory_space<smem>>
    %468 = vector.broadcast %467 : f32 to vector<2x128xf32>
    %469 = arith.mulf %87, %468 : vector<2x128xf32>
    %470 = arith.addf %466, %469 : vector<2x128xf32>
    %c112 = arith.constant 112 : index
    %471 = memref.load %arg1[%c112] : memref<215xf32, #tpu.memory_space<smem>>
    %472 = vector.broadcast %471 : f32 to vector<2x128xf32>
    %473 = arith.mulf %107, %472 : vector<2x128xf32>
    %474 = arith.addf %470, %473 : vector<2x128xf32>
    %c113 = arith.constant 113 : index
    %475 = memref.load %arg1[%c113] : memref<215xf32, #tpu.memory_space<smem>>
    %476 = vector.broadcast %475 : f32 to vector<2x128xf32>
    %477 = arith.mulf %127, %476 : vector<2x128xf32>
    %478 = arith.addf %474, %477 : vector<2x128xf32>
    %c114 = arith.constant 114 : index
    %479 = memref.load %arg1[%c114] : memref<215xf32, #tpu.memory_space<smem>>
    %480 = vector.broadcast %479 : f32 to vector<2x128xf32>
    %481 = arith.mulf %147, %480 : vector<2x128xf32>
    %482 = arith.addf %478, %481 : vector<2x128xf32>
    %c115 = arith.constant 115 : index
    %483 = memref.load %arg1[%c115] : memref<215xf32, #tpu.memory_space<smem>>
    %484 = vector.broadcast %483 : f32 to vector<2x128xf32>
    %485 = arith.mulf %167, %484 : vector<2x128xf32>
    %486 = arith.addf %482, %485 : vector<2x128xf32>
    %c116 = arith.constant 116 : index
    %487 = memref.load %arg1[%c116] : memref<215xf32, #tpu.memory_space<smem>>
    %488 = vector.broadcast %487 : f32 to vector<2x128xf32>
    %489 = arith.mulf %187, %488 : vector<2x128xf32>
    %490 = arith.addf %486, %489 : vector<2x128xf32>
    %c117 = arith.constant 117 : index
    %491 = memref.load %arg1[%c117] : memref<215xf32, #tpu.memory_space<smem>>
    %492 = vector.broadcast %491 : f32 to vector<2x128xf32>
    %493 = arith.mulf %207, %492 : vector<2x128xf32>
    %494 = arith.addf %490, %493 : vector<2x128xf32>
    %c118 = arith.constant 118 : index
    %495 = memref.load %arg1[%c118] : memref<215xf32, #tpu.memory_space<smem>>
    %496 = vector.broadcast %495 : f32 to vector<2x128xf32>
    %497 = arith.mulf %227, %496 : vector<2x128xf32>
    %498 = arith.addf %494, %497 : vector<2x128xf32>
    %c119 = arith.constant 119 : index
    %499 = memref.load %arg1[%c119] : memref<215xf32, #tpu.memory_space<smem>>
    %500 = vector.broadcast %499 : f32 to vector<2x128xf32>
    %501 = arith.mulf %247, %500 : vector<2x128xf32>
    %502 = arith.addf %498, %501 : vector<2x128xf32>
    %c160 = arith.constant 160 : index
    %503 = memref.load %arg1[%c160] : memref<215xf32, #tpu.memory_space<smem>>
    %504 = vector.broadcast %503 : f32 to vector<2x128xf32>
    %505 = arith.addf %502, %504 : vector<2x128xf32>
    %cst_27 = arith.constant 0.000000e+00 : f32
    %506 = vector.broadcast %cst_27 : f32 to vector<2x128xf32>
    %507 = arith.maximumf %505, %506 : vector<2x128xf32>
    %c120 = arith.constant 120 : index
    %508 = memref.load %arg1[%c120] : memref<215xf32, #tpu.memory_space<smem>>
    %509 = vector.broadcast %508 : f32 to vector<2x128xf32>
    %510 = arith.mulf %27, %509 : vector<2x128xf32>
    %c121 = arith.constant 121 : index
    %511 = memref.load %arg1[%c121] : memref<215xf32, #tpu.memory_space<smem>>
    %512 = vector.broadcast %511 : f32 to vector<2x128xf32>
    %513 = arith.mulf %47, %512 : vector<2x128xf32>
    %514 = arith.addf %510, %513 : vector<2x128xf32>
    %c122 = arith.constant 122 : index
    %515 = memref.load %arg1[%c122] : memref<215xf32, #tpu.memory_space<smem>>
    %516 = vector.broadcast %515 : f32 to vector<2x128xf32>
    %517 = arith.mulf %67, %516 : vector<2x128xf32>
    %518 = arith.addf %514, %517 : vector<2x128xf32>
    %c123 = arith.constant 123 : index
    %519 = memref.load %arg1[%c123] : memref<215xf32, #tpu.memory_space<smem>>
    %520 = vector.broadcast %519 : f32 to vector<2x128xf32>
    %521 = arith.mulf %87, %520 : vector<2x128xf32>
    %522 = arith.addf %518, %521 : vector<2x128xf32>
    %c124 = arith.constant 124 : index
    %523 = memref.load %arg1[%c124] : memref<215xf32, #tpu.memory_space<smem>>
    %524 = vector.broadcast %523 : f32 to vector<2x128xf32>
    %525 = arith.mulf %107, %524 : vector<2x128xf32>
    %526 = arith.addf %522, %525 : vector<2x128xf32>
    %c125 = arith.constant 125 : index
    %527 = memref.load %arg1[%c125] : memref<215xf32, #tpu.memory_space<smem>>
    %528 = vector.broadcast %527 : f32 to vector<2x128xf32>
    %529 = arith.mulf %127, %528 : vector<2x128xf32>
    %530 = arith.addf %526, %529 : vector<2x128xf32>
    %c126 = arith.constant 126 : index
    %531 = memref.load %arg1[%c126] : memref<215xf32, #tpu.memory_space<smem>>
    %532 = vector.broadcast %531 : f32 to vector<2x128xf32>
    %533 = arith.mulf %147, %532 : vector<2x128xf32>
    %534 = arith.addf %530, %533 : vector<2x128xf32>
    %c127 = arith.constant 127 : index
    %535 = memref.load %arg1[%c127] : memref<215xf32, #tpu.memory_space<smem>>
    %536 = vector.broadcast %535 : f32 to vector<2x128xf32>
    %537 = arith.mulf %167, %536 : vector<2x128xf32>
    %538 = arith.addf %534, %537 : vector<2x128xf32>
    %c128 = arith.constant 128 : index
    %539 = memref.load %arg1[%c128] : memref<215xf32, #tpu.memory_space<smem>>
    %540 = vector.broadcast %539 : f32 to vector<2x128xf32>
    %541 = arith.mulf %187, %540 : vector<2x128xf32>
    %542 = arith.addf %538, %541 : vector<2x128xf32>
    %c129 = arith.constant 129 : index
    %543 = memref.load %arg1[%c129] : memref<215xf32, #tpu.memory_space<smem>>
    %544 = vector.broadcast %543 : f32 to vector<2x128xf32>
    %545 = arith.mulf %207, %544 : vector<2x128xf32>
    %546 = arith.addf %542, %545 : vector<2x128xf32>
    %c130 = arith.constant 130 : index
    %547 = memref.load %arg1[%c130] : memref<215xf32, #tpu.memory_space<smem>>
    %548 = vector.broadcast %547 : f32 to vector<2x128xf32>
    %549 = arith.mulf %227, %548 : vector<2x128xf32>
    %550 = arith.addf %546, %549 : vector<2x128xf32>
    %c131 = arith.constant 131 : index
    %551 = memref.load %arg1[%c131] : memref<215xf32, #tpu.memory_space<smem>>
    %552 = vector.broadcast %551 : f32 to vector<2x128xf32>
    %553 = arith.mulf %247, %552 : vector<2x128xf32>
    %554 = arith.addf %550, %553 : vector<2x128xf32>
    %c161 = arith.constant 161 : index
    %555 = memref.load %arg1[%c161] : memref<215xf32, #tpu.memory_space<smem>>
    %556 = vector.broadcast %555 : f32 to vector<2x128xf32>
    %557 = arith.addf %554, %556 : vector<2x128xf32>
    %cst_28 = arith.constant 0.000000e+00 : f32
    %558 = vector.broadcast %cst_28 : f32 to vector<2x128xf32>
    %559 = arith.maximumf %557, %558 : vector<2x128xf32>
    %c132 = arith.constant 132 : index
    %560 = memref.load %arg1[%c132] : memref<215xf32, #tpu.memory_space<smem>>
    %561 = vector.broadcast %560 : f32 to vector<2x128xf32>
    %562 = arith.mulf %27, %561 : vector<2x128xf32>
    %c133 = arith.constant 133 : index
    %563 = memref.load %arg1[%c133] : memref<215xf32, #tpu.memory_space<smem>>
    %564 = vector.broadcast %563 : f32 to vector<2x128xf32>
    %565 = arith.mulf %47, %564 : vector<2x128xf32>
    %566 = arith.addf %562, %565 : vector<2x128xf32>
    %c134 = arith.constant 134 : index
    %567 = memref.load %arg1[%c134] : memref<215xf32, #tpu.memory_space<smem>>
    %568 = vector.broadcast %567 : f32 to vector<2x128xf32>
    %569 = arith.mulf %67, %568 : vector<2x128xf32>
    %570 = arith.addf %566, %569 : vector<2x128xf32>
    %c135 = arith.constant 135 : index
    %571 = memref.load %arg1[%c135] : memref<215xf32, #tpu.memory_space<smem>>
    %572 = vector.broadcast %571 : f32 to vector<2x128xf32>
    %573 = arith.mulf %87, %572 : vector<2x128xf32>
    %574 = arith.addf %570, %573 : vector<2x128xf32>
    %c136 = arith.constant 136 : index
    %575 = memref.load %arg1[%c136] : memref<215xf32, #tpu.memory_space<smem>>
    %576 = vector.broadcast %575 : f32 to vector<2x128xf32>
    %577 = arith.mulf %107, %576 : vector<2x128xf32>
    %578 = arith.addf %574, %577 : vector<2x128xf32>
    %c137 = arith.constant 137 : index
    %579 = memref.load %arg1[%c137] : memref<215xf32, #tpu.memory_space<smem>>
    %580 = vector.broadcast %579 : f32 to vector<2x128xf32>
    %581 = arith.mulf %127, %580 : vector<2x128xf32>
    %582 = arith.addf %578, %581 : vector<2x128xf32>
    %c138 = arith.constant 138 : index
    %583 = memref.load %arg1[%c138] : memref<215xf32, #tpu.memory_space<smem>>
    %584 = vector.broadcast %583 : f32 to vector<2x128xf32>
    %585 = arith.mulf %147, %584 : vector<2x128xf32>
    %586 = arith.addf %582, %585 : vector<2x128xf32>
    %c139 = arith.constant 139 : index
    %587 = memref.load %arg1[%c139] : memref<215xf32, #tpu.memory_space<smem>>
    %588 = vector.broadcast %587 : f32 to vector<2x128xf32>
    %589 = arith.mulf %167, %588 : vector<2x128xf32>
    %590 = arith.addf %586, %589 : vector<2x128xf32>
    %c140 = arith.constant 140 : index
    %591 = memref.load %arg1[%c140] : memref<215xf32, #tpu.memory_space<smem>>
    %592 = vector.broadcast %591 : f32 to vector<2x128xf32>
    %593 = arith.mulf %187, %592 : vector<2x128xf32>
    %594 = arith.addf %590, %593 : vector<2x128xf32>
    %c141 = arith.constant 141 : index
    %595 = memref.load %arg1[%c141] : memref<215xf32, #tpu.memory_space<smem>>
    %596 = vector.broadcast %595 : f32 to vector<2x128xf32>
    %597 = arith.mulf %207, %596 : vector<2x128xf32>
    %598 = arith.addf %594, %597 : vector<2x128xf32>
    %c142 = arith.constant 142 : index
    %599 = memref.load %arg1[%c142] : memref<215xf32, #tpu.memory_space<smem>>
    %600 = vector.broadcast %599 : f32 to vector<2x128xf32>
    %601 = arith.mulf %227, %600 : vector<2x128xf32>
    %602 = arith.addf %598, %601 : vector<2x128xf32>
    %c143 = arith.constant 143 : index
    %603 = memref.load %arg1[%c143] : memref<215xf32, #tpu.memory_space<smem>>
    %604 = vector.broadcast %603 : f32 to vector<2x128xf32>
    %605 = arith.mulf %247, %604 : vector<2x128xf32>
    %606 = arith.addf %602, %605 : vector<2x128xf32>
    %c162 = arith.constant 162 : index
    %607 = memref.load %arg1[%c162] : memref<215xf32, #tpu.memory_space<smem>>
    %608 = vector.broadcast %607 : f32 to vector<2x128xf32>
    %609 = arith.addf %606, %608 : vector<2x128xf32>
    %cst_29 = arith.constant 0.000000e+00 : f32
    %610 = vector.broadcast %cst_29 : f32 to vector<2x128xf32>
    %611 = arith.maximumf %609, %610 : vector<2x128xf32>
    %c144 = arith.constant 144 : index
    %612 = memref.load %arg1[%c144] : memref<215xf32, #tpu.memory_space<smem>>
    %613 = vector.broadcast %612 : f32 to vector<2x128xf32>
    %614 = arith.mulf %27, %613 : vector<2x128xf32>
    %c145 = arith.constant 145 : index
    %615 = memref.load %arg1[%c145] : memref<215xf32, #tpu.memory_space<smem>>
    %616 = vector.broadcast %615 : f32 to vector<2x128xf32>
    %617 = arith.mulf %47, %616 : vector<2x128xf32>
    %618 = arith.addf %614, %617 : vector<2x128xf32>
    %c146 = arith.constant 146 : index
    %619 = memref.load %arg1[%c146] : memref<215xf32, #tpu.memory_space<smem>>
    %620 = vector.broadcast %619 : f32 to vector<2x128xf32>
    %621 = arith.mulf %67, %620 : vector<2x128xf32>
    %622 = arith.addf %618, %621 : vector<2x128xf32>
    %c147 = arith.constant 147 : index
    %623 = memref.load %arg1[%c147] : memref<215xf32, #tpu.memory_space<smem>>
    %624 = vector.broadcast %623 : f32 to vector<2x128xf32>
    %625 = arith.mulf %87, %624 : vector<2x128xf32>
    %626 = arith.addf %622, %625 : vector<2x128xf32>
    %c148 = arith.constant 148 : index
    %627 = memref.load %arg1[%c148] : memref<215xf32, #tpu.memory_space<smem>>
    %628 = vector.broadcast %627 : f32 to vector<2x128xf32>
    %629 = arith.mulf %107, %628 : vector<2x128xf32>
    %630 = arith.addf %626, %629 : vector<2x128xf32>
    %c149 = arith.constant 149 : index
    %631 = memref.load %arg1[%c149] : memref<215xf32, #tpu.memory_space<smem>>
    %632 = vector.broadcast %631 : f32 to vector<2x128xf32>
    %633 = arith.mulf %127, %632 : vector<2x128xf32>
    %634 = arith.addf %630, %633 : vector<2x128xf32>
    %c150 = arith.constant 150 : index
    %635 = memref.load %arg1[%c150] : memref<215xf32, #tpu.memory_space<smem>>
    %636 = vector.broadcast %635 : f32 to vector<2x128xf32>
    %637 = arith.mulf %147, %636 : vector<2x128xf32>
    %638 = arith.addf %634, %637 : vector<2x128xf32>
    %c151 = arith.constant 151 : index
    %639 = memref.load %arg1[%c151] : memref<215xf32, #tpu.memory_space<smem>>
    %640 = vector.broadcast %639 : f32 to vector<2x128xf32>
    %641 = arith.mulf %167, %640 : vector<2x128xf32>
    %642 = arith.addf %638, %641 : vector<2x128xf32>
    %c152 = arith.constant 152 : index
    %643 = memref.load %arg1[%c152] : memref<215xf32, #tpu.memory_space<smem>>
    %644 = vector.broadcast %643 : f32 to vector<2x128xf32>
    %645 = arith.mulf %187, %644 : vector<2x128xf32>
    %646 = arith.addf %642, %645 : vector<2x128xf32>
    %c153 = arith.constant 153 : index
    %647 = memref.load %arg1[%c153] : memref<215xf32, #tpu.memory_space<smem>>
    %648 = vector.broadcast %647 : f32 to vector<2x128xf32>
    %649 = arith.mulf %207, %648 : vector<2x128xf32>
    %650 = arith.addf %646, %649 : vector<2x128xf32>
    %c154 = arith.constant 154 : index
    %651 = memref.load %arg1[%c154] : memref<215xf32, #tpu.memory_space<smem>>
    %652 = vector.broadcast %651 : f32 to vector<2x128xf32>
    %653 = arith.mulf %227, %652 : vector<2x128xf32>
    %654 = arith.addf %650, %653 : vector<2x128xf32>
    %c155 = arith.constant 155 : index
    %655 = memref.load %arg1[%c155] : memref<215xf32, #tpu.memory_space<smem>>
    %656 = vector.broadcast %655 : f32 to vector<2x128xf32>
    %657 = arith.mulf %247, %656 : vector<2x128xf32>
    %658 = arith.addf %654, %657 : vector<2x128xf32>
    %c163 = arith.constant 163 : index
    %659 = memref.load %arg1[%c163] : memref<215xf32, #tpu.memory_space<smem>>
    %660 = vector.broadcast %659 : f32 to vector<2x128xf32>
    %661 = arith.addf %658, %660 : vector<2x128xf32>
    %cst_30 = arith.constant 0.000000e+00 : f32
    %662 = vector.broadcast %cst_30 : f32 to vector<2x128xf32>
    %663 = arith.maximumf %661, %662 : vector<2x128xf32>
    %c164 = arith.constant 164 : index
    %664 = memref.load %arg1[%c164] : memref<215xf32, #tpu.memory_space<smem>>
    %665 = vector.broadcast %664 : f32 to vector<2x128xf32>
    %666 = arith.mulf %299, %665 : vector<2x128xf32>
    %c165 = arith.constant 165 : index
    %667 = memref.load %arg1[%c165] : memref<215xf32, #tpu.memory_space<smem>>
    %668 = vector.broadcast %667 : f32 to vector<2x128xf32>
    %669 = arith.mulf %351, %668 : vector<2x128xf32>
    %670 = arith.addf %666, %669 : vector<2x128xf32>
    %c166 = arith.constant 166 : index
    %671 = memref.load %arg1[%c166] : memref<215xf32, #tpu.memory_space<smem>>
    %672 = vector.broadcast %671 : f32 to vector<2x128xf32>
    %673 = arith.mulf %403, %672 : vector<2x128xf32>
    %674 = arith.addf %670, %673 : vector<2x128xf32>
    %c167 = arith.constant 167 : index
    %675 = memref.load %arg1[%c167] : memref<215xf32, #tpu.memory_space<smem>>
    %676 = vector.broadcast %675 : f32 to vector<2x128xf32>
    %677 = arith.mulf %455, %676 : vector<2x128xf32>
    %678 = arith.addf %674, %677 : vector<2x128xf32>
    %c168 = arith.constant 168 : index
    %679 = memref.load %arg1[%c168] : memref<215xf32, #tpu.memory_space<smem>>
    %680 = vector.broadcast %679 : f32 to vector<2x128xf32>
    %681 = arith.mulf %507, %680 : vector<2x128xf32>
    %682 = arith.addf %678, %681 : vector<2x128xf32>
    %c169 = arith.constant 169 : index
    %683 = memref.load %arg1[%c169] : memref<215xf32, #tpu.memory_space<smem>>
    %684 = vector.broadcast %683 : f32 to vector<2x128xf32>
    %685 = arith.mulf %559, %684 : vector<2x128xf32>
    %686 = arith.addf %682, %685 : vector<2x128xf32>
    %c170 = arith.constant 170 : index
    %687 = memref.load %arg1[%c170] : memref<215xf32, #tpu.memory_space<smem>>
    %688 = vector.broadcast %687 : f32 to vector<2x128xf32>
    %689 = arith.mulf %611, %688 : vector<2x128xf32>
    %690 = arith.addf %686, %689 : vector<2x128xf32>
    %c171 = arith.constant 171 : index
    %691 = memref.load %arg1[%c171] : memref<215xf32, #tpu.memory_space<smem>>
    %692 = vector.broadcast %691 : f32 to vector<2x128xf32>
    %693 = arith.mulf %663, %692 : vector<2x128xf32>
    %694 = arith.addf %690, %693 : vector<2x128xf32>
    %c196 = arith.constant 196 : index
    %695 = memref.load %arg1[%c196] : memref<215xf32, #tpu.memory_space<smem>>
    %696 = vector.broadcast %695 : f32 to vector<2x128xf32>
    %697 = arith.addf %694, %696 : vector<2x128xf32>
    %cst_31 = arith.constant 0.000000e+00 : f32
    %698 = vector.broadcast %cst_31 : f32 to vector<2x128xf32>
    %699 = arith.maximumf %697, %698 : vector<2x128xf32>
    %c172 = arith.constant 172 : index
    %700 = memref.load %arg1[%c172] : memref<215xf32, #tpu.memory_space<smem>>
    %701 = vector.broadcast %700 : f32 to vector<2x128xf32>
    %702 = arith.mulf %299, %701 : vector<2x128xf32>
    %c173 = arith.constant 173 : index
    %703 = memref.load %arg1[%c173] : memref<215xf32, #tpu.memory_space<smem>>
    %704 = vector.broadcast %703 : f32 to vector<2x128xf32>
    %705 = arith.mulf %351, %704 : vector<2x128xf32>
    %706 = arith.addf %702, %705 : vector<2x128xf32>
    %c174 = arith.constant 174 : index
    %707 = memref.load %arg1[%c174] : memref<215xf32, #tpu.memory_space<smem>>
    %708 = vector.broadcast %707 : f32 to vector<2x128xf32>
    %709 = arith.mulf %403, %708 : vector<2x128xf32>
    %710 = arith.addf %706, %709 : vector<2x128xf32>
    %c175 = arith.constant 175 : index
    %711 = memref.load %arg1[%c175] : memref<215xf32, #tpu.memory_space<smem>>
    %712 = vector.broadcast %711 : f32 to vector<2x128xf32>
    %713 = arith.mulf %455, %712 : vector<2x128xf32>
    %714 = arith.addf %710, %713 : vector<2x128xf32>
    %c176 = arith.constant 176 : index
    %715 = memref.load %arg1[%c176] : memref<215xf32, #tpu.memory_space<smem>>
    %716 = vector.broadcast %715 : f32 to vector<2x128xf32>
    %717 = arith.mulf %507, %716 : vector<2x128xf32>
    %718 = arith.addf %714, %717 : vector<2x128xf32>
    %c177 = arith.constant 177 : index
    %719 = memref.load %arg1[%c177] : memref<215xf32, #tpu.memory_space<smem>>
    %720 = vector.broadcast %719 : f32 to vector<2x128xf32>
    %721 = arith.mulf %559, %720 : vector<2x128xf32>
    %722 = arith.addf %718, %721 : vector<2x128xf32>
    %c178 = arith.constant 178 : index
    %723 = memref.load %arg1[%c178] : memref<215xf32, #tpu.memory_space<smem>>
    %724 = vector.broadcast %723 : f32 to vector<2x128xf32>
    %725 = arith.mulf %611, %724 : vector<2x128xf32>
    %726 = arith.addf %722, %725 : vector<2x128xf32>
    %c179 = arith.constant 179 : index
    %727 = memref.load %arg1[%c179] : memref<215xf32, #tpu.memory_space<smem>>
    %728 = vector.broadcast %727 : f32 to vector<2x128xf32>
    %729 = arith.mulf %663, %728 : vector<2x128xf32>
    %730 = arith.addf %726, %729 : vector<2x128xf32>
    %c197 = arith.constant 197 : index
    %731 = memref.load %arg1[%c197] : memref<215xf32, #tpu.memory_space<smem>>
    %732 = vector.broadcast %731 : f32 to vector<2x128xf32>
    %733 = arith.addf %730, %732 : vector<2x128xf32>
    %cst_32 = arith.constant 0.000000e+00 : f32
    %734 = vector.broadcast %cst_32 : f32 to vector<2x128xf32>
    %735 = arith.maximumf %733, %734 : vector<2x128xf32>
    %c180 = arith.constant 180 : index
    %736 = memref.load %arg1[%c180] : memref<215xf32, #tpu.memory_space<smem>>
    %737 = vector.broadcast %736 : f32 to vector<2x128xf32>
    %738 = arith.mulf %299, %737 : vector<2x128xf32>
    %c181 = arith.constant 181 : index
    %739 = memref.load %arg1[%c181] : memref<215xf32, #tpu.memory_space<smem>>
    %740 = vector.broadcast %739 : f32 to vector<2x128xf32>
    %741 = arith.mulf %351, %740 : vector<2x128xf32>
    %742 = arith.addf %738, %741 : vector<2x128xf32>
    %c182 = arith.constant 182 : index
    %743 = memref.load %arg1[%c182] : memref<215xf32, #tpu.memory_space<smem>>
    %744 = vector.broadcast %743 : f32 to vector<2x128xf32>
    %745 = arith.mulf %403, %744 : vector<2x128xf32>
    %746 = arith.addf %742, %745 : vector<2x128xf32>
    %c183 = arith.constant 183 : index
    %747 = memref.load %arg1[%c183] : memref<215xf32, #tpu.memory_space<smem>>
    %748 = vector.broadcast %747 : f32 to vector<2x128xf32>
    %749 = arith.mulf %455, %748 : vector<2x128xf32>
    %750 = arith.addf %746, %749 : vector<2x128xf32>
    %c184 = arith.constant 184 : index
    %751 = memref.load %arg1[%c184] : memref<215xf32, #tpu.memory_space<smem>>
    %752 = vector.broadcast %751 : f32 to vector<2x128xf32>
    %753 = arith.mulf %507, %752 : vector<2x128xf32>
    %754 = arith.addf %750, %753 : vector<2x128xf32>
    %c185 = arith.constant 185 : index
    %755 = memref.load %arg1[%c185] : memref<215xf32, #tpu.memory_space<smem>>
    %756 = vector.broadcast %755 : f32 to vector<2x128xf32>
    %757 = arith.mulf %559, %756 : vector<2x128xf32>
    %758 = arith.addf %754, %757 : vector<2x128xf32>
    %c186 = arith.constant 186 : index
    %759 = memref.load %arg1[%c186] : memref<215xf32, #tpu.memory_space<smem>>
    %760 = vector.broadcast %759 : f32 to vector<2x128xf32>
    %761 = arith.mulf %611, %760 : vector<2x128xf32>
    %762 = arith.addf %758, %761 : vector<2x128xf32>
    %c187 = arith.constant 187 : index
    %763 = memref.load %arg1[%c187] : memref<215xf32, #tpu.memory_space<smem>>
    %764 = vector.broadcast %763 : f32 to vector<2x128xf32>
    %765 = arith.mulf %663, %764 : vector<2x128xf32>
    %766 = arith.addf %762, %765 : vector<2x128xf32>
    %c198 = arith.constant 198 : index
    %767 = memref.load %arg1[%c198] : memref<215xf32, #tpu.memory_space<smem>>
    %768 = vector.broadcast %767 : f32 to vector<2x128xf32>
    %769 = arith.addf %766, %768 : vector<2x128xf32>
    %cst_33 = arith.constant 0.000000e+00 : f32
    %770 = vector.broadcast %cst_33 : f32 to vector<2x128xf32>
    %771 = arith.maximumf %769, %770 : vector<2x128xf32>
    %c188 = arith.constant 188 : index
    %772 = memref.load %arg1[%c188] : memref<215xf32, #tpu.memory_space<smem>>
    %773 = vector.broadcast %772 : f32 to vector<2x128xf32>
    %774 = arith.mulf %299, %773 : vector<2x128xf32>
    %c189 = arith.constant 189 : index
    %775 = memref.load %arg1[%c189] : memref<215xf32, #tpu.memory_space<smem>>
    %776 = vector.broadcast %775 : f32 to vector<2x128xf32>
    %777 = arith.mulf %351, %776 : vector<2x128xf32>
    %778 = arith.addf %774, %777 : vector<2x128xf32>
    %c190 = arith.constant 190 : index
    %779 = memref.load %arg1[%c190] : memref<215xf32, #tpu.memory_space<smem>>
    %780 = vector.broadcast %779 : f32 to vector<2x128xf32>
    %781 = arith.mulf %403, %780 : vector<2x128xf32>
    %782 = arith.addf %778, %781 : vector<2x128xf32>
    %c191 = arith.constant 191 : index
    %783 = memref.load %arg1[%c191] : memref<215xf32, #tpu.memory_space<smem>>
    %784 = vector.broadcast %783 : f32 to vector<2x128xf32>
    %785 = arith.mulf %455, %784 : vector<2x128xf32>
    %786 = arith.addf %782, %785 : vector<2x128xf32>
    %c192 = arith.constant 192 : index
    %787 = memref.load %arg1[%c192] : memref<215xf32, #tpu.memory_space<smem>>
    %788 = vector.broadcast %787 : f32 to vector<2x128xf32>
    %789 = arith.mulf %507, %788 : vector<2x128xf32>
    %790 = arith.addf %786, %789 : vector<2x128xf32>
    %c193 = arith.constant 193 : index
    %791 = memref.load %arg1[%c193] : memref<215xf32, #tpu.memory_space<smem>>
    %792 = vector.broadcast %791 : f32 to vector<2x128xf32>
    %793 = arith.mulf %559, %792 : vector<2x128xf32>
    %794 = arith.addf %790, %793 : vector<2x128xf32>
    %c194 = arith.constant 194 : index
    %795 = memref.load %arg1[%c194] : memref<215xf32, #tpu.memory_space<smem>>
    %796 = vector.broadcast %795 : f32 to vector<2x128xf32>
    %797 = arith.mulf %611, %796 : vector<2x128xf32>
    %798 = arith.addf %794, %797 : vector<2x128xf32>
    %c195 = arith.constant 195 : index
    %799 = memref.load %arg1[%c195] : memref<215xf32, #tpu.memory_space<smem>>
    %800 = vector.broadcast %799 : f32 to vector<2x128xf32>
    %801 = arith.mulf %663, %800 : vector<2x128xf32>
    %802 = arith.addf %798, %801 : vector<2x128xf32>
    %c199 = arith.constant 199 : index
    %803 = memref.load %arg1[%c199] : memref<215xf32, #tpu.memory_space<smem>>
    %804 = vector.broadcast %803 : f32 to vector<2x128xf32>
    %805 = arith.addf %802, %804 : vector<2x128xf32>
    %cst_34 = arith.constant 0.000000e+00 : f32
    %806 = vector.broadcast %cst_34 : f32 to vector<2x128xf32>
    %807 = arith.maximumf %805, %806 : vector<2x128xf32>
    %c200 = arith.constant 200 : index
    %808 = memref.load %arg1[%c200] : memref<215xf32, #tpu.memory_space<smem>>
    %809 = vector.broadcast %808 : f32 to vector<2x128xf32>
    %810 = arith.mulf %699, %809 : vector<2x128xf32>
    %c201 = arith.constant 201 : index
    %811 = memref.load %arg1[%c201] : memref<215xf32, #tpu.memory_space<smem>>
    %812 = vector.broadcast %811 : f32 to vector<2x128xf32>
    %813 = arith.mulf %735, %812 : vector<2x128xf32>
    %814 = arith.addf %810, %813 : vector<2x128xf32>
    %c202 = arith.constant 202 : index
    %815 = memref.load %arg1[%c202] : memref<215xf32, #tpu.memory_space<smem>>
    %816 = vector.broadcast %815 : f32 to vector<2x128xf32>
    %817 = arith.mulf %771, %816 : vector<2x128xf32>
    %818 = arith.addf %814, %817 : vector<2x128xf32>
    %c203 = arith.constant 203 : index
    %819 = memref.load %arg1[%c203] : memref<215xf32, #tpu.memory_space<smem>>
    %820 = vector.broadcast %819 : f32 to vector<2x128xf32>
    %821 = arith.mulf %807, %820 : vector<2x128xf32>
    %822 = arith.addf %818, %821 : vector<2x128xf32>
    %c212 = arith.constant 212 : index
    %823 = memref.load %arg1[%c212] : memref<215xf32, #tpu.memory_space<smem>>
    %824 = vector.broadcast %823 : f32 to vector<2x128xf32>
    %825 = arith.addf %822, %824 : vector<2x128xf32>
    %c204 = arith.constant 204 : index
    %826 = memref.load %arg1[%c204] : memref<215xf32, #tpu.memory_space<smem>>
    %827 = vector.broadcast %826 : f32 to vector<2x128xf32>
    %828 = arith.mulf %699, %827 : vector<2x128xf32>
    %c205 = arith.constant 205 : index
    %829 = memref.load %arg1[%c205] : memref<215xf32, #tpu.memory_space<smem>>
    %830 = vector.broadcast %829 : f32 to vector<2x128xf32>
    %831 = arith.mulf %735, %830 : vector<2x128xf32>
    %832 = arith.addf %828, %831 : vector<2x128xf32>
    %c206 = arith.constant 206 : index
    %833 = memref.load %arg1[%c206] : memref<215xf32, #tpu.memory_space<smem>>
    %834 = vector.broadcast %833 : f32 to vector<2x128xf32>
    %835 = arith.mulf %771, %834 : vector<2x128xf32>
    %836 = arith.addf %832, %835 : vector<2x128xf32>
    %c207 = arith.constant 207 : index
    %837 = memref.load %arg1[%c207] : memref<215xf32, #tpu.memory_space<smem>>
    %838 = vector.broadcast %837 : f32 to vector<2x128xf32>
    %839 = arith.mulf %807, %838 : vector<2x128xf32>
    %840 = arith.addf %836, %839 : vector<2x128xf32>
    %c213 = arith.constant 213 : index
    %841 = memref.load %arg1[%c213] : memref<215xf32, #tpu.memory_space<smem>>
    %842 = vector.broadcast %841 : f32 to vector<2x128xf32>
    %843 = arith.addf %840, %842 : vector<2x128xf32>
    %c208 = arith.constant 208 : index
    %844 = memref.load %arg1[%c208] : memref<215xf32, #tpu.memory_space<smem>>
    %845 = vector.broadcast %844 : f32 to vector<2x128xf32>
    %846 = arith.mulf %699, %845 : vector<2x128xf32>
    %c209 = arith.constant 209 : index
    %847 = memref.load %arg1[%c209] : memref<215xf32, #tpu.memory_space<smem>>
    %848 = vector.broadcast %847 : f32 to vector<2x128xf32>
    %849 = arith.mulf %735, %848 : vector<2x128xf32>
    %850 = arith.addf %846, %849 : vector<2x128xf32>
    %c210 = arith.constant 210 : index
    %851 = memref.load %arg1[%c210] : memref<215xf32, #tpu.memory_space<smem>>
    %852 = vector.broadcast %851 : f32 to vector<2x128xf32>
    %853 = arith.mulf %771, %852 : vector<2x128xf32>
    %854 = arith.addf %850, %853 : vector<2x128xf32>
    %c211 = arith.constant 211 : index
    %855 = memref.load %arg1[%c211] : memref<215xf32, #tpu.memory_space<smem>>
    %856 = vector.broadcast %855 : f32 to vector<2x128xf32>
    %857 = arith.mulf %807, %856 : vector<2x128xf32>
    %858 = arith.addf %854, %857 : vector<2x128xf32>
    %c214 = arith.constant 214 : index
    %859 = memref.load %arg1[%c214] : memref<215xf32, #tpu.memory_space<smem>>
    %860 = vector.broadcast %859 : f32 to vector<2x128xf32>
    %861 = arith.addf %858, %860 : vector<2x128xf32>
    %c0_35 = arith.constant 0 : index
    %c0_36 = arith.constant 0 : index
    %c0_37 = arith.constant 0 : index
    %862 = vector.load %arg3[%c0_35, %c0_36, %c0_37] : memref<3x2x128xf32, #tpu.memory_space<vmem>>, vector<1x2x128xf32>
    %863 = vector.shape_cast %862 : vector<1x2x128xf32> to vector<2x128xf32>
    %864 = vector.shape_cast %825 : vector<2x128xf32> to vector<1x2x128xf32>
    tpu.vector_store %arg3[%c0_35, %c0_36, %c0_37], %864 {strides = array<i32>} : memref<3x2x128xf32, #tpu.memory_space<vmem>>, vector<1x2x128xf32>,
    %c1_38 = arith.constant 1 : index
    %c0_39 = arith.constant 0 : index
    %c0_40 = arith.constant 0 : index
    %865 = vector.load %arg3[%c1_38, %c0_39, %c0_40] : memref<3x2x128xf32, #tpu.memory_space<vmem>>, vector<1x2x128xf32>
    %866 = vector.shape_cast %865 : vector<1x2x128xf32> to vector<2x128xf32>
    %867 = vector.shape_cast %843 : vector<2x128xf32> to vector<1x2x128xf32>
    tpu.vector_store %arg3[%c1_38, %c0_39, %c0_40], %867 {strides = array<i32>} : memref<3x2x128xf32, #tpu.memory_space<vmem>>, vector<1x2x128xf32>,
    %c2_41 = arith.constant 2 : index
    %c0_42 = arith.constant 0 : index
    %c0_43 = arith.constant 0 : index
    %868 = vector.load %arg3[%c2_41, %c0_42, %c0_43] : memref<3x2x128xf32, #tpu.memory_space<vmem>>, vector<1x2x128xf32>
    %869 = vector.shape_cast %868 : vector<1x2x128xf32> to vector<2x128xf32>
    %870 = vector.shape_cast %861 : vector<2x128xf32> to vector<1x2x128xf32>
    tpu.vector_store %arg3[%c2_41, %c0_42, %c0_43], %870 {strides = array<i32>} : memref<3x2x128xf32, #tpu.memory_space<vmem>>, vector<1x2x128xf32>,
    return
  }
  func.func @transform_0(%arg0: i32) -> i32 {
    %c0_i32 = arith.constant 0 : i32
    %c0_i32_0 = arith.constant 0 : i32
    return %c0_i32 : i32
  }
  func.func @transform_1(%arg0: i32) -> (i32, i32, i32) {
    %c0_i32 = arith.constant 0 : i32
    %c0_i32_0 = arith.constant 0 : i32
    %c0_i32_1 = arith.constant 0 : i32
    return %c0_i32, %arg0, %c0_i32_0 : i32, i32, i32
  }
  func.func @transform_2(%arg0: i32) -> (i32, i32, i32) {
    %c0_i32 = arith.constant 0 : i32
    %c0_i32_0 = arith.constant 0 : i32
    %c0_i32_1 = arith.constant 0 : i32
    return %c0_i32, %arg0, %c0_i32_0 : i32, i32, i32
  }
}

</mosaic_0001>

<llo_original>
// kernel: tpu_custom_call.1
$region0: #{tpu_custom_call.1}
  #allocation0 [shape = 'u32[]', space=smem, size = 0x4, offset = 0x4, fixed_abs, tag = 'smem constant byte address 0x4 - core index']
  #allocation1 [shape = 'u32[72,128]{1,0:T(1,128)}', space=vmem, size = 0x9000, scoped, tag = 'internal scratch']
  %s0 = inlined_call_operand.hbm [shape: f32[215], index: 0, kind: input, shape index: {}]
  %s1 = inlined_call_operand.hbm [shape: f32[4,2,128], index: 1, kind: input, shape index: {}]
  %s2 = inlined_call_operand.hbm [shape: f32[3,2,128], index: 2, kind: output, shape index: {}]
  %s3 = sld [smem:[#allocation0]]
  $region26: #{tpu_custom_call.1} parent=0
    _
  %s5 = ssub.s32 1, %s3
  %s6 = scalar_select 0, %s5, %s3
  $region1: #{tpu_custom_call.1} parent=0
    #allocation2 [shape = 'u8[1024]{0}', space=smem, size = 0x400, scoped, tag = 'input window, operand 0, single buffered']
    #allocation3 [shape = 's32[1]{0}', space=sflag, size = 0x4, scoped, tag = 'scoped memory for tpu_custom_call.1']
    #allocation4 [shape = 's32[1]{0}', space=sflag, size = 0x4, scoped, tag = 'scoped memory for tpu_custom_call.1']
    #allocation5 [shape = 's32[1]{0}', space=sflag, size = 0x4, scoped, tag = 'scoped memory for tpu_custom_call.1']
    #allocation6 [shape = 'u8[4096]{0}', space=vmem, size = 0x1000, scoped, tag = 'input window, operand 1, single buffered']
    #allocation7 [shape = 'u8[3072]{0}', space=vmem, size = 0xc00, scoped, tag = 'output window, operand 0, single buffered']
    %7 = vsyncpa [#allocation5], 0
    %8 = vsyncpa [#allocation3], 0
    %9 = vsyncpa [#allocation4], 0
    // Predicated region
    $region2: #{tpu_custom_call.1} parent=1 // pred_check
      _
    $region3: #{tpu_custom_call.1} parent=1 // pred_check_branch
      %11 = sbr.rel (0) target = $region5
    $region4: #{tpu_custom_call.1} parent=1 // pred_region
      %13 = vsyncadd [#allocation5], 0
      %s15 = sshll.u32 %s0, 4
      %s16 = int_to_ptr.hbm [resolvable:$true] %s15
      %18 = dma.hbm_to_smem %s16, 32, [#allocation2], [#allocation5]
    $region5: #{tpu_custom_call.1} parent=1 // pred_fallthru
      _
    // Predicated region
    $region6: #{tpu_custom_call.1} parent=1 // pred_check
      _
    $region7: #{tpu_custom_call.1} parent=1 // pred_check_branch
      %20 = sbr.rel (0) target = $region9
    $region8: #{tpu_custom_call.1} parent=1 // pred_region
      %22 = vsyncadd [#allocation3], 0
      %s23 = sshll.u32 %s1, 4
      %s24 = int_to_ptr.hbm [resolvable:$true] %s23
      %s25 = sshll.u32 [#allocation6], 4
      %s26 = int_to_ptr.vmem [resolvable:$true] %s25
      %31 = dma.hbm_to_vmem [thread:$0]  %s24, 128, %s26, [#allocation3], 32, 32, 2
    $region9: #{tpu_custom_call.1} parent=1 // pred_fallthru
      _
    // Predicated region
    $region10: #{tpu_custom_call.1} parent=1 // pred_check
      _
    $region11: #{tpu_custom_call.1} parent=1 // pred_check_branch
      %33 = sbr.rel (0) target = $region13
    $region12: #{tpu_custom_call.1} parent=1 // pred_region
      %35 = dma.done [#allocation5], 32
    $region13: #{tpu_custom_call.1} parent=1 // pred_fallthru
      _
    // Predicated region
    $region14: #{tpu_custom_call.1} parent=1 // pred_check
      _
    $region15: #{tpu_custom_call.1} parent=1 // pred_check_branch
      %37 = sbr.rel (0) target = $region17
    $region16: #{tpu_custom_call.1} parent=1 // pred_region
      %39 = dma.done [#allocation3], 128
    $region17: #{tpu_custom_call.1} parent=1 // pred_fallthru
      _
    %40 = sfence
    %v41 = vld [vmem:[#allocation6] sm:$0x3]
    %s42 = scalar_lea.vmem [#allocation6], 2
    %v43 = vld [vmem:[%s42] sm:$0x3]
    %s44 = scalar_lea.vmem [#allocation6], 4
    %v45 = vld [vmem:[%s44] sm:$0x3]
    %s46 = scalar_lea.vmem [#allocation6], 6
    %v47 = vld [vmem:[%s46] sm:$0x3]
    %s48 = sld [smem:[#allocation2]]
    %v49 = vstv %s48
    %v50 = vmul.f32 %v41, %v49
    %s51 = sld [smem:[#allocation2 + $0x1]]
    %v52 = vstv %s51
    %v53 = vmul.f32 %v43, %v52
    %v54 = vadd.f32 %v50, %v53
    %s55 = sld [smem:[#allocation2 + $0x2]]
    %v56 = vstv %s55
    %v57 = vmul.f32 %v45, %v56
    %v58 = vadd.f32 %v54, %v57
    %s59 = sld [smem:[#allocation2 + $0x3]]
    %v60 = vstv %s59
    %v61 = vmul.f32 %v47, %v60
    %v62 = vadd.f32 %v58, %v61
    %s63 = sld [smem:[#allocation2 + $0x30]]
    %v64 = vstv %s63
    %v65 = vadd.f32 %v62, %v64
    %v66 = vmax.f32 %v65, 0.0
    %s67 = sld [smem:[#allocation2 + $0x4]]
    %v68 = vstv %s67
    %v69 = vmul.f32 %v41, %v68
    %s70 = sld [smem:[#allocation2 + $0x5]]
    %v71 = vstv %s70
    %v72 = vmul.f32 %v43, %v71
    %v73 = vadd.f32 %v69, %v72
    %s74 = sld [smem:[#allocation2 + $0x6]]
    %v75 = vstv %s74
    %v76 = vmul.f32 %v45, %v75
    %v77 = vadd.f32 %v73, %v76
    %s78 = sld [smem:[#allocation2 + $0x7]]
    %v79 = vstv %s78
    %v80 = vmul.f32 %v47, %v79
    %v81 = vadd.f32 %v77, %v80
    %s82 = sld [smem:[#allocation2 + $0x31]]
    %v83 = vstv %s82
    %v84 = vadd.f32 %v81, %v83
    %v85 = vmax.f32 %v84, 0.0
    %s86 = sld [smem:[#allocation2 + $0x8]]
    %v87 = vstv %s86
    %v88 = vmul.f32 %v41, %v87
    %s89 = sld [smem:[#allocation2 + $0x9]]
    %v90 = vstv %s89
    %v91 = vmul.f32 %v43, %v90
    %v92 = vadd.f32 %v88, %v91
    %s93 = sld [smem:[#allocation2 + $0xa]]
    %v94 = vstv %s93
    %v95 = vmul.f32 %v45, %v94
    %v96 = vadd.f32 %v92, %v95
    %s97 = sld [smem:[#allocation2 + $0xb]]
    %v98 = vstv %s97
    %v99 = vmul.f32 %v47, %v98
    %v100 = vadd.f32 %v96, %v99
    %s101 = sld [smem:[#allocation2 + $0x32]]
    %v102 = vstv %s101
    %v103 = vadd.f32 %v100, %v102
    %v104 = vmax.f32 %v103, 0.0
    %s105 = sld [smem:[#allocation2 + $0xc]]
    %v106 = vstv %s105
    %v107 = vmul.f32 %v41, %v106
    %s108 = sld [smem:[#allocation2 + $0xd]]
    %v109 = vstv %s108
    %v110 = vmul.f32 %v43, %v109
    %v111 = vadd.f32 %v107, %v110
    %s112 = sld [smem:[#allocation2 + $0xe]]
    %v113 = vstv %s112
    %v114 = vmul.f32 %v45, %v113
    %v115 = vadd.f32 %v111, %v114
    %s116 = sld [smem:[#allocation2 + $0xf]]
    %v117 = vstv %s116
    %v118 = vmul.f32 %v47, %v117
    %v119 = vadd.f32 %v115, %v118
    %s120 = sld [smem:[#allocation2 + $0x33]]
    %v121 = vstv %s120
    %v122 = vadd.f32 %v119, %v121
    %v123 = vmax.f32 %v122, 0.0
    %s124 = sld [smem:[#allocation2 + $0x10]]
    %v125 = vstv %s124
    %v126 = vmul.f32 %v41, %v125
    %s127 = sld [smem:[#allocation2 + $0x11]]
    %v128 = vstv %s127
    %v129 = vmul.f32 %v43, %v128
    %v130 = vadd.f32 %v126, %v129
    %s131 = sld [smem:[#allocation2 + $0x12]]
    %v132 = vstv %s131
    %v133 = vmul.f32 %v45, %v132
    %v134 = vadd.f32 %v130, %v133
    %s135 = sld [smem:[#allocation2 + $0x13]]
    %v136 = vstv %s135
    %v137 = vmul.f32 %v47, %v136
    %v138 = vadd.f32 %v134, %v137
    %s139 = sld [smem:[#allocation2 + $0x34]]
    %v140 = vstv %s139
    %v141 = vadd.f32 %v138, %v140
    %v142 = vmax.f32 %v141, 0.0
    %s143 = sld [smem:[#allocation2 + $0x14]]
    %v144 = vstv %s143
    %v145 = vmul.f32 %v41, %v144
    %s146 = sld [smem:[#allocation2 + $0x15]]
    %v147 = vstv %s146
    %v148 = vmul.f32 %v43, %v147
    %v149 = vadd.f32 %v145, %v148
    %s150 = sld [smem:[#allocation2 + $0x16]]
    %v151 = vstv %s150
    %v152 = vmul.f32 %v45, %v151
    %v153 = vadd.f32 %v149, %v152
    %s154 = sld [smem:[#allocation2 + $0x17]]
    %v155 = vstv %s154
    %v156 = vmul.f32 %v47, %v155
    %v157 = vadd.f32 %v153, %v156
    %s158 = sld [smem:[#allocation2 + $0x35]]
    %v159 = vstv %s158
    %v160 = vadd.f32 %v157, %v159
    %v161 = vmax.f32 %v160, 0.0
    %s162 = sld [smem:[#allocation2 + $0x18]]
    %v163 = vstv %s162
    %v164 = vmul.f32 %v41, %v163
    %s165 = sld [smem:[#allocation2 + $0x19]]
    %v166 = vstv %s165
    %v167 = vmul.f32 %v43, %v166
    %v168 = vadd.f32 %v164, %v167
    %s169 = sld [smem:[#allocation2 + $0x1a]]
    %v170 = vstv %s169
    %v171 = vmul.f32 %v45, %v170
    %v172 = vadd.f32 %v168, %v171
    %s173 = sld [smem:[#allocation2 + $0x1b]]
    %v174 = vstv %s173
    %v175 = vmul.f32 %v47, %v174
    %v176 = vadd.f32 %v172, %v175
    %s177 = sld [smem:[#allocation2 + $0x36]]
    %v178 = vstv %s177
    %v179 = vadd.f32 %v176, %v178
    %v180 = vmax.f32 %v179, 0.0
    %s181 = sld [smem:[#allocation2 + $0x1c]]
    %v182 = vstv %s181
    %v183 = vmul.f32 %v41, %v182
    %s184 = sld [smem:[#allocation2 + $0x1d]]
    %v185 = vstv %s184
    %v186 = vmul.f32 %v43, %v185
    %v187 = vadd.f32 %v183, %v186
    %s188 = sld [smem:[#allocation2 + $0x1e]]
    %v189 = vstv %s188
    %v190 = vmul.f32 %v45, %v189
    %v191 = vadd.f32 %v187, %v190
    %s192 = sld [smem:[#allocation2 + $0x1f]]
    %v193 = vstv %s192
    %v194 = vmul.f32 %v47, %v193
    %v195 = vadd.f32 %v191, %v194
    %s196 = sld [smem:[#allocation2 + $0x37]]
    %v197 = vstv %s196
    %v198 = vadd.f32 %v195, %v197
    %v199 = vmax.f32 %v198, 0.0
    %s200 = sld [smem:[#allocation2 + $0x20]]
    %v201 = vstv %s200
    %v202 = vmul.f32 %v41, %v201
    %s203 = sld [smem:[#allocation2 + $0x21]]
    %v204 = vstv %s203
    %v205 = vmul.f32 %v43, %v204
    %v206 = vadd.f32 %v202, %v205
    %s207 = sld [smem:[#allocation2 + $0x22]]
    %v208 = vstv %s207
    %v209 = vmul.f32 %v45, %v208
    %v210 = vadd.f32 %v206, %v209
    %s211 = sld [smem:[#allocation2 + $0x23]]
    %v212 = vstv %s211
    %v213 = vmul.f32 %v47, %v212
    %v214 = vadd.f32 %v210, %v213
    %s215 = sld [smem:[#allocation2 + $0x38]]
    %v216 = vstv %s215
    %v217 = vadd.f32 %v214, %v216
    %v218 = vmax.f32 %v217, 0.0
    %s219 = sld [smem:[#allocation2 + $0x24]]
    %v220 = vstv %s219
    %v221 = vmul.f32 %v41, %v220
    %s222 = sld [smem:[#allocation2 + $0x25]]
    %v223 = vstv %s222
    %v224 = vmul.f32 %v43, %v223
    %v225 = vadd.f32 %v221, %v224
    %s226 = sld [smem:[#allocation2 + $0x26]]
    %v227 = vstv %s226
    %v228 = vmul.f32 %v45, %v227
    %v229 = vadd.f32 %v225, %v228
    %s230 = sld [smem:[#allocation2 + $0x27]]
    %v231 = vstv %s230
    %v232 = vmul.f32 %v47, %v231
    %v233 = vadd.f32 %v229, %v232
    %s234 = sld [smem:[#allocation2 + $0x39]]
    %v235 = vstv %s234
    %v236 = vadd.f32 %v233, %v235
    %v237 = vmax.f32 %v236, 0.0
    %s238 = sld [smem:[#allocation2 + $0x28]]
    %v239 = vstv %s238
    %v240 = vmul.f32 %v41, %v239
    %s241 = sld [smem:[#allocation2 + $0x29]]
    %v242 = vstv %s241
    %v243 = vmul.f32 %v43, %v242
    %v244 = vadd.f32 %v240, %v243
    %s245 = sld [smem:[#allocation2 + $0x2a]]
    %v246 = vstv %s245
    %v247 = vmul.f32 %v45, %v246
    %v248 = vadd.f32 %v244, %v247
    %s249 = sld [smem:[#allocation2 + $0x2b]]
    %v250 = vstv %s249
    %v251 = vmul.f32 %v47, %v250
    %v252 = vadd.f32 %v248, %v251
    %s253 = sld [smem:[#allocation2 + $0x3a]]
    %v254 = vstv %s253
    %v255 = vadd.f32 %v252, %v254
    %v256 = vmax.f32 %v255, 0.0
    %s257 = sld [smem:[#allocation2 + $0x2c]]
    %v258 = vstv %s257
    %v259 = vmul.f32 %v41, %v258
    %s260 = sld [smem:[#allocation2 + $0x2d]]
    %v261 = vstv %s260
    %v262 = vmul.f32 %v43, %v261
    %v263 = vadd.f32 %v259, %v262
    %s264 = sld [smem:[#allocation2 + $0x2e]]
    %v265 = vstv %s264
    %v266 = vmul.f32 %v45, %v265
    %v267 = vadd.f32 %v263, %v266
    %s268 = sld [smem:[#allocation2 + $0x2f]]
    %v269 = vstv %s268
    %v270 = vmul.f32 %v47, %v269
    %v271 = vadd.f32 %v267, %v270
    %s272 = sld [smem:[#allocation2 + $0x3b]]
    %v273 = vstv %s272
    %v274 = vadd.f32 %v271, %v273
    %v275 = vmax.f32 %v274, 0.0
    %s276 = sld [smem:[#allocation2 + $0x3c]]
    %v277 = vstv %s276
    %v278 = vmul.f32 %v66, %v277
    %s279 = sld [smem:[#allocation2 + $0x3d]]
    %v280 = vstv %s279
    %v281 = vmul.f32 %v85, %v280
    %v282 = vadd.f32 %v278, %v281
    %s283 = sld [smem:[#allocation2 + $0x3e]]
    %v284 = vstv %s283
    %v285 = vmul.f32 %v104, %v284
    %v286 = vadd.f32 %v282, %v285
    %s287 = sld [smem:[#allocation2 + $0x3f]]
    %v288 = vstv %s287
    %v289 = vmul.f32 %v123, %v288
    %v290 = vadd.f32 %v286, %v289
    %s291 = sld [smem:[#allocation2 + $0x40]]
    %v292 = vstv %s291
    %v293 = vmul.f32 %v142, %v292
    %v294 = vadd.f32 %v290, %v293
    %s295 = sld [smem:[#allocation2 + $0x41]]
    %v296 = vstv %s295
    %v297 = vmul.f32 %v161, %v296
    %v298 = vadd.f32 %v294, %v297
    %s299 = sld [smem:[#allocation2 + $0x42]]
    %v300 = vstv %s299
    %v301 = vmul.f32 %v180, %v300
    %v302 = vadd.f32 %v298, %v301
    %s303 = sld [smem:[#allocation2 + $0x43]]
    %v304 = vstv %s303
    %v305 = vmul.f32 %v199, %v304
    %v306 = vadd.f32 %v302, %v305
    %s307 = sld [smem:[#allocation2 + $0x44]]
    %v308 = vstv %s307
    %v309 = vmul.f32 %v218, %v308
    %v310 = vadd.f32 %v306, %v309
    %s311 = sld [smem:[#allocation2 + $0x45]]
    %v312 = vstv %s311
    %v313 = vmul.f32 %v237, %v312
    %v314 = vadd.f32 %v310, %v313
    %s315 = sld [smem:[#allocation2 + $0x46]]
    %v316 = vstv %s315
    %v317 = vmul.f32 %v256, %v316
    %v318 = vadd.f32 %v314, %v317
    %s319 = sld [smem:[#allocation2 + $0x47]]
    %v320 = vstv %s319
    %v321 = vmul.f32 %v275, %v320
    %v322 = vadd.f32 %v318, %v321
    %s323 = sld [smem:[#allocation2 + $0x9c]]
    %v324 = vstv %s323
    %v325 = vadd.f32 %v322, %v324
    %v326 = vmax.f32 %v325, 0.0
    %s327 = sld [smem:[#allocation2 + $0x48]]
    %v328 = vstv %s327
    %v329 = vmul.f32 %v66, %v328
    %s330 = sld [smem:[#allocation2 + $0x49]]
    %v331 = vstv %s330
    %v332 = vmul.f32 %v85, %v331
    %v333 = vadd.f32 %v329, %v332
    %s334 = sld [smem:[#allocation2 + $0x4a]]
    %v335 = vstv %s334
    %v336 = vmul.f32 %v104, %v335
    %v337 = vadd.f32 %v333, %v336
    %s338 = sld [smem:[#allocation2 + $0x4b]]
    %v339 = vstv %s338
    %v340 = vmul.f32 %v123, %v339
    %v341 = vadd.f32 %v337, %v340
    %s342 = sld [smem:[#allocation2 + $0x4c]]
    %v343 = vstv %s342
    %v344 = vmul.f32 %v142, %v343
    %v345 = vadd.f32 %v341, %v344
    %s346 = sld [smem:[#allocation2 + $0x4d]]
    %v347 = vstv %s346
    %v348 = vmul.f32 %v161, %v347
    %v349 = vadd.f32 %v345, %v348
    %s350 = sld [smem:[#allocation2 + $0x4e]]
    %v351 = vstv %s350
    %v352 = vmul.f32 %v180, %v351
    %v353 = vadd.f32 %v349, %v352
    %s354 = sld [smem:[#allocation2 + $0x4f]]
    %v355 = vstv %s354
    %v356 = vmul.f32 %v199, %v355
    %v357 = vadd.f32 %v353, %v356
    %s358 = sld [smem:[#allocation2 + $0x50]]
    %v359 = vstv %s358
    %v360 = vmul.f32 %v218, %v359
    %v361 = vadd.f32 %v357, %v360
    %s362 = sld [smem:[#allocation2 + $0x51]]
    %v363 = vstv %s362
    %v364 = vmul.f32 %v237, %v363
    %v365 = vadd.f32 %v361, %v364
    %s366 = sld [smem:[#allocation2 + $0x52]]
    %v367 = vstv %s366
    %v368 = vmul.f32 %v256, %v367
    %v369 = vadd.f32 %v365, %v368
    %s370 = sld [smem:[#allocation2 + $0x53]]
    %v371 = vstv %s370
    %v372 = vmul.f32 %v275, %v371
    %v373 = vadd.f32 %v369, %v372
    %s374 = sld [smem:[#allocation2 + $0x9d]]
    %v375 = vstv %s374
    %v376 = vadd.f32 %v373, %v375
    %v377 = vmax.f32 %v376, 0.0
    %s378 = sld [smem:[#allocation2 + $0x54]]
    %v379 = vstv %s378
    %v380 = vmul.f32 %v66, %v379
    %s381 = sld [smem:[#allocation2 + $0x55]]
    %v382 = vstv %s381
    %v383 = vmul.f32 %v85, %v382
    %v384 = vadd.f32 %v380, %v383
    %s385 = sld [smem:[#allocation2 + $0x56]]
    %v386 = vstv %s385
    %v387 = vmul.f32 %v104, %v386
    %v388 = vadd.f32 %v384, %v387
    %s389 = sld [smem:[#allocation2 + $0x57]]
    %v390 = vstv %s389
    %v391 = vmul.f32 %v123, %v390
    %v392 = vadd.f32 %v388, %v391
    %s393 = sld [smem:[#allocation2 + $0x58]]
    %v394 = vstv %s393
    %v395 = vmul.f32 %v142, %v394
    %v396 = vadd.f32 %v392, %v395
    %s397 = sld [smem:[#allocation2 + $0x59]]
    %v398 = vstv %s397
    %v399 = vmul.f32 %v161, %v398
    %v400 = vadd.f32 %v396, %v399
    %s401 = sld [smem:[#allocation2 + $0x5a]]
    %v402 = vstv %s401
    %v403 = vmul.f32 %v180, %v402
    %v404 = vadd.f32 %v400, %v403
    %s405 = sld [smem:[#allocation2 + $0x5b]]
    %v406 = vstv %s405
    %v407 = vmul.f32 %v199, %v406
    %v408 = vadd.f32 %v404, %v407
    %s409 = sld [smem:[#allocation2 + $0x5c]]
    %v410 = vstv %s409
    %v411 = vmul.f32 %v218, %v410
    %v412 = vadd.f32 %v408, %v411
    %s413 = sld [smem:[#allocation2 + $0x5d]]
    %v414 = vstv %s413
    %v415 = vmul.f32 %v237, %v414
    %v416 = vadd.f32 %v412, %v415
    %s417 = sld [smem:[#allocation2 + $0x5e]]
    %v418 = vstv %s417
    %v419 = vmul.f32 %v256, %v418
    %v420 = vadd.f32 %v416, %v419
    %s421 = sld [smem:[#allocation2 + $0x5f]]
    %v422 = vstv %s421
    %v423 = vmul.f32 %v275, %v422
    %v424 = vadd.f32 %v420, %v423
    %s425 = sld [smem:[#allocation2 + $0x9e]]
    %v426 = vstv %s425
    %v427 = vadd.f32 %v424, %v426
    %v428 = vmax.f32 %v427, 0.0
    %s429 = sld [smem:[#allocation2 + $0x60]]
    %v430 = vstv %s429
    %v431 = vmul.f32 %v66, %v430
    %s432 = sld [smem:[#allocation2 + $0x61]]
    %v433 = vstv %s432
    %v434 = vmul.f32 %v85, %v433
    %v435 = vadd.f32 %v431, %v434
    %s436 = sld [smem:[#allocation2 + $0x62]]
    %v437 = vstv %s436
    %v438 = vmul.f32 %v104, %v437
    %v439 = vadd.f32 %v435, %v438
    %s440 = sld [smem:[#allocation2 + $0x63]]
    %v441 = vstv %s440
    %v442 = vmul.f32 %v123, %v441
    %v443 = vadd.f32 %v439, %v442
    %s444 = sld [smem:[#allocation2 + $0x64]]
    %v445 = vstv %s444
    %v446 = vmul.f32 %v142, %v445
    %v447 = vadd.f32 %v443, %v446
    %s448 = sld [smem:[#allocation2 + $0x65]]
    %v449 = vstv %s448
    %v450 = vmul.f32 %v161, %v449
    %v451 = vadd.f32 %v447, %v450
    %s452 = sld [smem:[#allocation2 + $0x66]]
    %v453 = vstv %s452
    %v454 = vmul.f32 %v180, %v453
    %v455 = vadd.f32 %v451, %v454
    %s456 = sld [smem:[#allocation2 + $0x67]]
    %v457 = vstv %s456
    %v458 = vmul.f32 %v199, %v457
    %v459 = vadd.f32 %v455, %v458
    %s460 = sld [smem:[#allocation2 + $0x68]]
    %v461 = vstv %s460
    %v462 = vmul.f32 %v218, %v461
    %v463 = vadd.f32 %v459, %v462
    %s464 = sld [smem:[#allocation2 + $0x69]]
    %v465 = vstv %s464
    %v466 = vmul.f32 %v237, %v465
    %v467 = vadd.f32 %v463, %v466
    %s468 = sld [smem:[#allocation2 + $0x6a]]
    %v469 = vstv %s468
    %v470 = vmul.f32 %v256, %v469
    %v471 = vadd.f32 %v467, %v470
    %s472 = sld [smem:[#allocation2 + $0x6b]]
    %v473 = vstv %s472
    %v474 = vmul.f32 %v275, %v473
    %v475 = vadd.f32 %v471, %v474
    %s476 = sld [smem:[#allocation2 + $0x9f]]
    %v477 = vstv %s476
    %v478 = vadd.f32 %v475, %v477
    %v479 = vmax.f32 %v478, 0.0
    %s480 = sld [smem:[#allocation2 + $0x6c]]
    %v481 = vstv %s480
    %v482 = vmul.f32 %v66, %v481
    %s483 = sld [smem:[#allocation2 + $0x6d]]
    %v484 = vstv %s483
    %v485 = vmul.f32 %v85, %v484
    %v486 = vadd.f32 %v482, %v485
    %s487 = sld [smem:[#allocation2 + $0x6e]]
    %v488 = vstv %s487
    %v489 = vmul.f32 %v104, %v488
    %v490 = vadd.f32 %v486, %v489
    %s491 = sld [smem:[#allocation2 + $0x6f]]
    %v492 = vstv %s491
    %v493 = vmul.f32 %v123, %v492
    %v494 = vadd.f32 %v490, %v493
    %s495 = sld [smem:[#allocation2 + $0x70]]
    %v496 = vstv %s495
    %v497 = vmul.f32 %v142, %v496
    %v498 = vadd.f32 %v494, %v497
    %s499 = sld [smem:[#allocation2 + $0x71]]
    %v500 = vstv %s499
    %v501 = vmul.f32 %v161, %v500
    %v502 = vadd.f32 %v498, %v501
    %s503 = sld [smem:[#allocation2 + $0x72]]
    %v504 = vstv %s503
    %v505 = vmul.f32 %v180, %v504
    %v506 = vadd.f32 %v502, %v505
    %s507 = sld [smem:[#allocation2 + $0x73]]
    %v508 = vstv %s507
    %v509 = vmul.f32 %v199, %v508
    %v510 = vadd.f32 %v506, %v509
    %s511 = sld [smem:[#allocation2 + $0x74]]
    %v512 = vstv %s511
    %v513 = vmul.f32 %v218, %v512
    %v514 = vadd.f32 %v510, %v513
    %s515 = sld [smem:[#allocation2 + $0x75]]
    %v516 = vstv %s515
    %v517 = vmul.f32 %v237, %v516
    %v518 = vadd.f32 %v514, %v517
    %s519 = sld [smem:[#allocation2 + $0x76]]
    %v520 = vstv %s519
    %v521 = vmul.f32 %v256, %v520
    %v522 = vadd.f32 %v518, %v521
    %s523 = sld [smem:[#allocation2 + $0x77]]
    %v524 = vstv %s523
    %v525 = vmul.f32 %v275, %v524
    %v526 = vadd.f32 %v522, %v525
    %s527 = sld [smem:[#allocation2 + $0xa0]]
    %v528 = vstv %s527
    %v529 = vadd.f32 %v526, %v528
    %v530 = vmax.f32 %v529, 0.0
    %s531 = sld [smem:[#allocation2 + $0x78]]
    %v532 = vstv %s531
    %v533 = vmul.f32 %v66, %v532
    %s534 = sld [smem:[#allocation2 + $0x79]]
    %v535 = vstv %s534
    %v536 = vmul.f32 %v85, %v535
    %v537 = vadd.f32 %v533, %v536
    %s538 = sld [smem:[#allocation2 + $0x7a]]
    %v539 = vstv %s538
    %v540 = vmul.f32 %v104, %v539
    %v541 = vadd.f32 %v537, %v540
    %s542 = sld [smem:[#allocation2 + $0x7b]]
    %v543 = vstv %s542
    %v544 = vmul.f32 %v123, %v543
    %v545 = vadd.f32 %v541, %v544
    %s546 = sld [smem:[#allocation2 + $0x7c]]
    %v547 = vstv %s546
    %v548 = vmul.f32 %v142, %v547
    %v549 = vadd.f32 %v545, %v548
    %s550 = sld [smem:[#allocation2 + $0x7d]]
    %v551 = vstv %s550
    %v552 = vmul.f32 %v161, %v551
    %v553 = vadd.f32 %v549, %v552
    %s554 = sld [smem:[#allocation2 + $0x7e]]
    %v555 = vstv %s554
    %v556 = vmul.f32 %v180, %v555
    %v557 = vadd.f32 %v553, %v556
    %s558 = sld [smem:[#allocation2 + $0x7f]]
    %v559 = vstv %s558
    %v560 = vmul.f32 %v199, %v559
    %v561 = vadd.f32 %v557, %v560
    %s562 = sld [smem:[#allocation2 + $0x80]]
    %v563 = vstv %s562
    %v564 = vmul.f32 %v218, %v563
    %v565 = vadd.f32 %v561, %v564
    %s566 = sld [smem:[#allocation2 + $0x81]]
    %v567 = vstv %s566
    %v568 = vmul.f32 %v237, %v567
    %v569 = vadd.f32 %v565, %v568
    %s570 = sld [smem:[#allocation2 + $0x82]]
    %v571 = vstv %s570
    %v572 = vmul.f32 %v256, %v571
    %v573 = vadd.f32 %v569, %v572
    %s574 = sld [smem:[#allocation2 + $0x83]]
    %v575 = vstv %s574
    %v576 = vmul.f32 %v275, %v575
    %v577 = vadd.f32 %v573, %v576
    %s578 = sld [smem:[#allocation2 + $0xa1]]
    %v579 = vstv %s578
    %v580 = vadd.f32 %v577, %v579
    %v581 = vmax.f32 %v580, 0.0
    %s582 = sld [smem:[#allocation2 + $0x84]]
    %v583 = vstv %s582
    %v584 = vmul.f32 %v66, %v583
    %s585 = sld [smem:[#allocation2 + $0x85]]
    %v586 = vstv %s585
    %v587 = vmul.f32 %v85, %v586
    %v588 = vadd.f32 %v584, %v587
    %s589 = sld [smem:[#allocation2 + $0x86]]
    %v590 = vstv %s589
    %v591 = vmul.f32 %v104, %v590
    %v592 = vadd.f32 %v588, %v591
    %s593 = sld [smem:[#allocation2 + $0x87]]
    %v594 = vstv %s593
    %v595 = vmul.f32 %v123, %v594
    %v596 = vadd.f32 %v592, %v595
    %s597 = sld [smem:[#allocation2 + $0x88]]
    %v598 = vstv %s597
    %v599 = vmul.f32 %v142, %v598
    %v600 = vadd.f32 %v596, %v599
    %s601 = sld [smem:[#allocation2 + $0x89]]
    %v602 = vstv %s601
    %v603 = vmul.f32 %v161, %v602
    %v604 = vadd.f32 %v600, %v603
    %s605 = sld [smem:[#allocation2 + $0x8a]]
    %v606 = vstv %s605
    %v607 = vmul.f32 %v180, %v606
    %v608 = vadd.f32 %v604, %v607
    %s609 = sld [smem:[#allocation2 + $0x8b]]
    %v610 = vstv %s609
    %v611 = vmul.f32 %v199, %v610
    %v612 = vadd.f32 %v608, %v611
    %s613 = sld [smem:[#allocation2 + $0x8c]]
    %v614 = vstv %s613
    %v615 = vmul.f32 %v218, %v614
    %v616 = vadd.f32 %v612, %v615
    %s617 = sld [smem:[#allocation2 + $0x8d]]
    %v618 = vstv %s617
    %v619 = vmul.f32 %v237, %v618
    %v620 = vadd.f32 %v616, %v619
    %s621 = sld [smem:[#allocation2 + $0x8e]]
    %v622 = vstv %s621
    %v623 = vmul.f32 %v256, %v622
    %v624 = vadd.f32 %v620, %v623
    %s625 = sld [smem:[#allocation2 + $0x8f]]
    %v626 = vstv %s625
    %v627 = vmul.f32 %v275, %v626
    %v628 = vadd.f32 %v624, %v627
    %s629 = sld [smem:[#allocation2 + $0xa2]]
    %v630 = vstv %s629
    %v631 = vadd.f32 %v628, %v630
    %v632 = vmax.f32 %v631, 0.0
    %s633 = sld [smem:[#allocation2 + $0x90]]
    %v634 = vstv %s633
    %v635 = vmul.f32 %v66, %v634
    %s636 = sld [smem:[#allocation2 + $0x91]]
    %v637 = vstv %s636
    %v638 = vmul.f32 %v85, %v637
    %v639 = vadd.f32 %v635, %v638
    %s640 = sld [smem:[#allocation2 + $0x92]]
    %v641 = vstv %s640
    %v642 = vmul.f32 %v104, %v641
    %v643 = vadd.f32 %v639, %v642
    %s644 = sld [smem:[#allocation2 + $0x93]]
    %v645 = vstv %s644
    %v646 = vmul.f32 %v123, %v645
    %v647 = vadd.f32 %v643, %v646
    %s648 = sld [smem:[#allocation2 + $0x94]]
    %v649 = vstv %s648
    %v650 = vmul.f32 %v142, %v649
    %v651 = vadd.f32 %v647, %v650
    %s652 = sld [smem:[#allocation2 + $0x95]]
    %v653 = vstv %s652
    %v654 = vmul.f32 %v161, %v653
    %v655 = vadd.f32 %v651, %v654
    %s656 = sld [smem:[#allocation2 + $0x96]]
    %v657 = vstv %s656
    %v658 = vmul.f32 %v180, %v657
    %v659 = vadd.f32 %v655, %v658
    %s660 = sld [smem:[#allocation2 + $0x97]]
    %v661 = vstv %s660
    %v662 = vmul.f32 %v199, %v661
    %v663 = vadd.f32 %v659, %v662
    %s664 = sld [smem:[#allocation2 + $0x98]]
    %v665 = vstv %s664
    %v666 = vmul.f32 %v218, %v665
    %v667 = vadd.f32 %v663, %v666
    %s668 = sld [smem:[#allocation2 + $0x99]]
    %v669 = vstv %s668
    %v670 = vmul.f32 %v237, %v669
    %v671 = vadd.f32 %v667, %v670
    %s672 = sld [smem:[#allocation2 + $0x9a]]
    %v673 = vstv %s672
    %v674 = vmul.f32 %v256, %v673
    %v675 = vadd.f32 %v671, %v674
    %s676 = sld [smem:[#allocation2 + $0x9b]]
    %v677 = vstv %s676
    %v678 = vmul.f32 %v275, %v677
    %v679 = vadd.f32 %v675, %v678
    %s680 = sld [smem:[#allocation2 + $0xa3]]
    %v681 = vstv %s680
    %v682 = vadd.f32 %v679, %v681
    %v683 = vmax.f32 %v682, 0.0
    %s684 = sld [smem:[#allocation2 + $0xa4]]
    %v685 = vstv %s684
    %v686 = vmul.f32 %v326, %v685
    %s687 = sld [smem:[#allocation2 + $0xa5]]
    %v688 = vstv %s687
    %v689 = vmul.f32 %v377, %v688
    %v690 = vadd.f32 %v686, %v689
    %s691 = sld [smem:[#allocation2 + $0xa6]]
    %v692 = vstv %s691
    %v693 = vmul.f32 %v428, %v692
    %v694 = vadd.f32 %v690, %v693
    %s695 = sld [smem:[#allocation2 + $0xa7]]
    %v696 = vstv %s695
    %v697 = vmul.f32 %v479, %v696
    %v698 = vadd.f32 %v694, %v697
    %s699 = sld [smem:[#allocation2 + $0xa8]]
    %v700 = vstv %s699
    %v701 = vmul.f32 %v530, %v700
    %v702 = vadd.f32 %v698, %v701
    %s703 = sld [smem:[#allocation2 + $0xa9]]
    %v704 = vstv %s703
    %v705 = vmul.f32 %v581, %v704
    %v706 = vadd.f32 %v702, %v705
    %s707 = sld [smem:[#allocation2 + $0xaa]]
    %v708 = vstv %s707
    %v709 = vmul.f32 %v632, %v708
    %v710 = vadd.f32 %v706, %v709
    %s711 = sld [smem:[#allocation2 + $0xab]]
    %v712 = vstv %s711
    %v713 = vmul.f32 %v683, %v712
    %v714 = vadd.f32 %v710, %v713
    %s715 = sld [smem:[#allocation2 + $0xc4]]
    %v716 = vstv %s715
    %v717 = vadd.f32 %v714, %v716
    %v718 = vmax.f32 %v717, 0.0
    %s719 = sld [smem:[#allocation2 + $0xac]]
    %v720 = vstv %s719
    %v721 = vmul.f32 %v326, %v720
    %s722 = sld [smem:[#allocation2 + $0xad]]
    %v723 = vstv %s722
    %v724 = vmul.f32 %v377, %v723
    %v725 = vadd.f32 %v721, %v724
    %s726 = sld [smem:[#allocation2 + $0xae]]
    %v727 = vstv %s726
    %v728 = vmul.f32 %v428, %v727
    %v729 = vadd.f32 %v725, %v728
    %s730 = sld [smem:[#allocation2 + $0xaf]]
    %v731 = vstv %s730
    %v732 = vmul.f32 %v479, %v731
    %v733 = vadd.f32 %v729, %v732
    %s734 = sld [smem:[#allocation2 + $0xb0]]
    %v735 = vstv %s734
    %v736 = vmul.f32 %v530, %v735
    %v737 = vadd.f32 %v733, %v736
    %s738 = sld [smem:[#allocation2 + $0xb1]]
    %v739 = vstv %s738
    %v740 = vmul.f32 %v581, %v739
    %v741 = vadd.f32 %v737, %v740
    %s742 = sld [smem:[#allocation2 + $0xb2]]
    %v743 = vstv %s742
    %v744 = vmul.f32 %v632, %v743
    %v745 = vadd.f32 %v741, %v744
    %s746 = sld [smem:[#allocation2 + $0xb3]]
    %v747 = vstv %s746
    %v748 = vmul.f32 %v683, %v747
    %v749 = vadd.f32 %v745, %v748
    %s750 = sld [smem:[#allocation2 + $0xc5]]
    %v751 = vstv %s750
    %v752 = vadd.f32 %v749, %v751
    %v753 = vmax.f32 %v752, 0.0
    %s754 = sld [smem:[#allocation2 + $0xb4]]
    %v755 = vstv %s754
    %v756 = vmul.f32 %v326, %v755
    %s757 = sld [smem:[#allocation2 + $0xb5]]
    %v758 = vstv %s757
    %v759 = vmul.f32 %v377, %v758
    %v760 = vadd.f32 %v756, %v759
    %s761 = sld [smem:[#allocation2 + $0xb6]]
    %v762 = vstv %s761
    %v763 = vmul.f32 %v428, %v762
    %v764 = vadd.f32 %v760, %v763
    %s765 = sld [smem:[#allocation2 + $0xb7]]
    %v766 = vstv %s765
    %v767 = vmul.f32 %v479, %v766
    %v768 = vadd.f32 %v764, %v767
    %s769 = sld [smem:[#allocation2 + $0xb8]]
    %v770 = vstv %s769
    %v771 = vmul.f32 %v530, %v770
    %v772 = vadd.f32 %v768, %v771
    %s773 = sld [smem:[#allocation2 + $0xb9]]
    %v774 = vstv %s773
    %v775 = vmul.f32 %v581, %v774
    %v776 = vadd.f32 %v772, %v775
    %s777 = sld [smem:[#allocation2 + $0xba]]
    %v778 = vstv %s777
    %v779 = vmul.f32 %v632, %v778
    %v780 = vadd.f32 %v776, %v779
    %s781 = sld [smem:[#allocation2 + $0xbb]]
    %v782 = vstv %s781
    %v783 = vmul.f32 %v683, %v782
    %v784 = vadd.f32 %v780, %v783
    %s785 = sld [smem:[#allocation2 + $0xc6]]
    %v786 = vstv %s785
    %v787 = vadd.f32 %v784, %v786
    %v788 = vmax.f32 %v787, 0.0
    %s789 = sld [smem:[#allocation2 + $0xbc]]
    %v790 = vstv %s789
    %v791 = vmul.f32 %v326, %v790
    %s792 = sld [smem:[#allocation2 + $0xbd]]
    %v793 = vstv %s792
    %v794 = vmul.f32 %v377, %v793
    %v795 = vadd.f32 %v791, %v794
    %s796 = sld [smem:[#allocation2 + $0xbe]]
    %v797 = vstv %s796
    %v798 = vmul.f32 %v428, %v797
    %v799 = vadd.f32 %v795, %v798
    %s800 = sld [smem:[#allocation2 + $0xbf]]
    %v801 = vstv %s800
    %v802 = vmul.f32 %v479, %v801
    %v803 = vadd.f32 %v799, %v802
    %s804 = sld [smem:[#allocation2 + $0xc0]]
    %v805 = vstv %s804
    %v806 = vmul.f32 %v530, %v805
    %v807 = vadd.f32 %v803, %v806
    %s808 = sld [smem:[#allocation2 + $0xc1]]
    %v809 = vstv %s808
    %v810 = vmul.f32 %v581, %v809
    %v811 = vadd.f32 %v807, %v810
    %s812 = sld [smem:[#allocation2 + $0xc2]]
    %v813 = vstv %s812
    %v814 = vmul.f32 %v632, %v813
    %v815 = vadd.f32 %v811, %v814
    %s816 = sld [smem:[#allocation2 + $0xc3]]
    %v817 = vstv %s816
    %v818 = vmul.f32 %v683, %v817
    %v819 = vadd.f32 %v815, %v818
    %s820 = sld [smem:[#allocation2 + $0xc7]]
    %v821 = vstv %s820
    %v822 = vadd.f32 %v819, %v821
    %v823 = vmax.f32 %v822, 0.0
    %s824 = sld [smem:[#allocation2 + $0xc8]]
    %v825 = vstv %s824
    %v826 = vmul.f32 %v718, %v825
    %s827 = sld [smem:[#allocation2 + $0xc9]]
    %v828 = vstv %s827
    %v829 = vmul.f32 %v753, %v828
    %v830 = vadd.f32 %v826, %v829
    %s831 = sld [smem:[#allocation2 + $0xca]]
    %v832 = vstv %s831
    %v833 = vmul.f32 %v788, %v832
    %v834 = vadd.f32 %v830, %v833
    %s835 = sld [smem:[#allocation2 + $0xcb]]
    %v836 = vstv %s835
    %v837 = vmul.f32 %v823, %v836
    %v838 = vadd.f32 %v834, %v837
    %s839 = sld [smem:[#allocation2 + $0xd4]]
    %v840 = vstv %s839
    %v841 = vadd.f32 %v838, %v840
    %s842 = sld [smem:[#allocation2 + $0xcc]]
    %v843 = vstv %s842
    %v844 = vmul.f32 %v718, %v843
    %s845 = sld [smem:[#allocation2 + $0xcd]]
    %v846 = vstv %s845
    %v847 = vmul.f32 %v753, %v846
    %v848 = vadd.f32 %v844, %v847
    %s849 = sld [smem:[#allocation2 + $0xce]]
    %v850 = vstv %s849
    %v851 = vmul.f32 %v788, %v850
    %v852 = vadd.f32 %v848, %v851
    %s853 = sld [smem:[#allocation2 + $0xcf]]
    %v854 = vstv %s853
    %v855 = vmul.f32 %v823, %v854
    %v856 = vadd.f32 %v852, %v855
    %s857 = sld [smem:[#allocation2 + $0xd5]]
    %v858 = vstv %s857
    %v859 = vadd.f32 %v856, %v858
    %s860 = sld [smem:[#allocation2 + $0xd0]]
    %v861 = vstv %s860
    %v862 = vmul.f32 %v718, %v861
    %s863 = sld [smem:[#allocation2 + $0xd1]]
    %v864 = vstv %s863
    %v865 = vmul.f32 %v753, %v864
    %v866 = vadd.f32 %v862, %v865
    %s867 = sld [smem:[#allocation2 + $0xd2]]
    %v868 = vstv %s867
    %v869 = vmul.f32 %v788, %v868
    %v870 = vadd.f32 %v866, %v869
    %s871 = sld [smem:[#allocation2 + $0xd3]]
    %v872 = vstv %s871
    %v873 = vmul.f32 %v823, %v872
    %v874 = vadd.f32 %v870, %v873
    %s875 = sld [smem:[#allocation2 + $0xd6]]
    %v876 = vstv %s875
    %v877 = vadd.f32 %v874, %v876
    %878 = vst [vmem:[#allocation7] sm:$0x3] %v841
    %s879 = scalar_lea.vmem [#allocation7], 2
    %880 = vst [vmem:[%s879] sm:$0x3] %v859
    %s881 = scalar_lea.vmem [#allocation7], 4
    %882 = vst [vmem:[%s881] sm:$0x3] %v877
    // Predicated region
    $region18: #{tpu_custom_call.1} parent=1 // pred_check
      _
    $region19: #{tpu_custom_call.1} parent=1 // pred_check_branch
      %884 = sbr.rel (0) target = $region21
    $region20: #{tpu_custom_call.1} parent=1 // pred_region
      %886 = vsyncadd [#allocation4], 0
      %s887 = sshll.u32 [#allocation7], 4
      %s888 = int_to_ptr.vmem [resolvable:$true] %s887
      %s889 = sshll.u32 %s2, 4
      %s890 = int_to_ptr.hbm [resolvable:$true] %s889
      %895 = dma.vmem_to_hbm [thread:$0]  %s888, 96, %s890, [#allocation4], 32, 32, 2
    $region21: #{tpu_custom_call.1} parent=1 // pred_fallthru
      _
    // Predicated region
    $region22: #{tpu_custom_call.1} parent=1 // pred_check
      _
    $region23: #{tpu_custom_call.1} parent=1 // pred_check_branch
      %897 = sbr.rel (0) target = $region25
    $region24: #{tpu_custom_call.1} parent=1 // pred_region
      %899 = dma.done [#allocation4], 96
    $region25: #{tpu_custom_call.1} parent=1 // pred_fallthru
      _
    %900 = vsyncpa [#allocation3], 1
    %901 = vsyncpa [#allocation4], 1
    %902 = vsyncpa [#allocation5], 1

</llo_original>
